<compile_context>
chip_gen: v5e
topology: v5e:2x2
jax: 0.10.0
libtpu: 0.0.40
codegen_flags: <defaults>
</compile_context>

<pallas_src>
import numpy as np
import jax
import jax.numpy as jnp
from jax.experimental import pallas as pl
from jax.experimental.pallas import tpu as pltpu

# ---- scaled-down, lane-dense stand-in sizes (PyTorch originals in comments) ----
B = 2                 # batch
S = 8                 # sequence length
VOCAB = 128           # vocab size (stand-in; real BERT vocab ~30k)
H = 128               # BERT hidden size                 (768)
F = 128               # fc1/fc2 out, Block out, fc3 in   (512)
CHUNKS = 4            # Block fusion chunks              (20)
CS = 32               # chunk size = MM // CHUNKS        (80)
MM = CHUNKS * CS      # Block fusion mm_dim = 128        (1600)
RANK = 4              # Block fusion rank                (15)
RS = RANK * CS        # per-chunk merge width = 128      (1200)
NC = 4                # number of classes                (4)
NB = 2 * B            # stacked text + entity batch
OUT_PAD = 128         # lane-dense padded output width

# ---- bf16 weight-slab row offsets (all multiples of 16 = bf16 sublane tile) ----
OFF_WEMB = 0                          # word_emb            [VOCAB, H]
OFF_POSEMB = OFF_WEMB + VOCAB         # pos_emb             [S, H]   (padded to 16 rows)
OFF_POOLW = OFF_POSEMB + 16           # pool_w              [H, H]
OFF_FCW = OFF_POOLW + H               # [fc1_w ; fc2_w]     [2H, F]  (text rows ; entity rows)
OFF_LW = OFF_FCW + 2 * H              # [l1_w ; l0_w]       [2F, MM]
OFF_MERGEW = OFF_LW + 2 * F           # RANK x [2MM, MM] per-rank chunk-block-diag merge weights
OFF_CSUM = OFF_MERGEW + RANK * 2 * MM  # per-chunk sum matrix       [MM, 128] (cols>=CHUNKS zero)
OFF_CBC = OFF_CSUM + MM               # per-chunk broadcast matrix [128, MM] (rows>=CHUNKS zero)
OFF_LOUTW = OFF_CBC + 128             # lout_w              [MM, F]
OFF_FC3W = OFF_LOUTW + MM             # fc3_w padded        [F, 128] (cols>=NC zero)
W_ROWS = OFF_FC3W + F                 # = 2320 rows -> ~0.57 MB bf16

# ---- f32 bias-slab row offsets (multiples of 8 = f32 sublane tile) ----
OFF_POOLB = 0                         # pool_b  row 0
OFF_FCB = 8                           # per-row fc bias   [NB, F]  (rows 0..B-1 fc1_b, B..2B-1 fc2_b)
OFF_LB = 16                           # per-row l  bias   [NB, MM] (l1_b ; l0_b)
OFF_MB = 24                           # RANK blocks of 8 rows: per-rank merge bias [NB, MM]
OFF_LOUTB = OFF_MB + RANK * 8         # lout_b row
OFF_FC3B = OFF_LOUTB + 8              # fc3_b padded row (lanes>=NC zero)
B_ROWS = OFF_FC3B + 8                 # = 72 rows -> 36 KB f32


# --------------------------------------------------------------------------
# Single fused kernel: embed + pool + fc1/fc2 + Block fusion + fc3 + relu
# --------------------------------------------------------------------------
def fused_kernel(ids_ref, mask_ref, w_ref, b_ref, out_ref):
    f32 = jnp.float32
    bf16 = jnp.bfloat16
    ids = ids_ref[...]                                   # [NB, S] int32
    mask = mask_ref[...]                                 # [NB, S] f32

    # ---- BERT stand-in pooler: embedding "gather" (one-hot count matmul) +
    #      masked mean over the sequence + dense + tanh.
    # TODO(synk): at real vocab sizes this becomes an HBM row-gather (scalar
    # prefetch + pl.Element / manual DMA), not a VMEM-resident one-hot matmul.
    iota_v = jax.lax.broadcasted_iota(jnp.int32, (NB, VOCAB), 1)
    cnt = jnp.zeros((NB, VOCAB), f32)
    for s in range(S):                                   # static unroll, S tiny
        cnt = cnt + mask[:, s:s + 1] * (ids[:, s:s + 1] == iota_v).astype(f32)

    wemb = w_ref[OFF_WEMB:OFF_WEMB + VOCAB, :]           # bf16 [VOCAB, H]
    posemb = w_ref[OFF_POSEMB:OFF_POSEMB + S, :]         # bf16 [S, H]
    summed = (jnp.dot(cnt.astype(bf16), wemb, preferred_element_type=f32)
              + jnp.dot(mask.astype(bf16), posemb, preferred_element_type=f32))  # [NB, H]
    denom = jnp.maximum(jnp.sum(mask, axis=1, keepdims=True), 1.0)               # [NB, 1]
    mean = summed / denom                                                        # exact divide
    pool_w = w_ref[OFF_POOLW:OFF_POOLW + H, :]
    pool_b = b_ref[OFF_POOLB:OFF_POOLB + 1, :]
    pooled = jnp.tanh(jnp.dot(mean.astype(bf16), pool_w, preferred_element_type=f32)
                      + pool_b)                                                  # [NB, H]

    # ---- stream masks: rows 0..B-1 = text, rows B..2B-1 = entity
    rows = jax.lax.broadcasted_iota(jnp.int32, (NB, 1), 0)
    tmask = (rows < B).astype(f32)                       # [NB, 1]
    emask = 1.0 - tmask

    def dual_stream_linear(x, w_off, k, bias_rows):
        # One matmul for both streams: text rows go through the first k weight
        # rows, entity rows through the next k (input lanes zero-masked per row).
        xe = jnp.concatenate([x * tmask, x * emask], axis=1).astype(bf16)        # [NB, 2k]
        return jnp.dot(xe, w_ref[w_off:w_off + 2 * k, :],
                       preferred_element_type=f32) + bias_rows

    # fc1 (text) / fc2 (entity) in one packed matmul on the stacked batch
    y = dual_stream_linear(pooled, OFF_FCW, H, b_ref[OFF_FCB:OFF_FCB + NB, :])   # [NB, F]

    # Block fusion linear1 (text) / linear0 (entity)
    x = dual_stream_linear(y, OFF_LW, F, b_ref[OFF_LB:OFF_LB + NB, :])           # [NB, MM]

    # ---- chunked merge linears + rank reduction, inputs = [entity_out, text_out]
    # Per-rank [2MM, MM] chunk-block-diagonal weight slices; rank sum is a free
    # VPU accumulation (no [CHUNKS*RS, MM] constant matmul).
    # TODO(synk): at production dims use dense [CHUNKS, CS, RS] weights with a
    # chunk grid axis / batched einsum (block-diag packing inflates CHUNKS×).
    xe = jnp.concatenate([x * tmask, x * emask], axis=1).astype(bf16)            # [NB, 2*MM]
    z = jnp.zeros((B, MM), f32)
    for r in range(RANK):                                # static unroll, RANK tiny
        w_r = w_ref[OFF_MERGEW + r * 2 * MM:OFF_MERGEW + (r + 1) * 2 * MM, :]    # [2MM, MM]
        b_r = b_ref[OFF_MB + r * 8:OFF_MB + r * 8 + NB, :]                       # [NB, MM]
        p_r = jnp.dot(xe, w_r, preferred_element_type=f32) + b_r                 # [NB, MM]
        z = z + p_r[:B, :] * p_r[B:, :]                  # text-row × entity-row per batch

    # power norm (signed sqrt) + per-chunk L2 normalize (pos_norm='before_cat').
    # Per-chunk sum-of-squares factored: sum (MM->CHUNKS) then broadcast back.
    zs = jnp.sqrt(jnp.abs(z))
    z = jnp.where(z >= 0.0, zs, -zs)
    csum = w_ref[OFF_CSUM:OFF_CSUM + MM, :].astype(f32)  # [MM, 128] 0/1
    cbc = w_ref[OFF_CBC:OFF_CBC + 128, :].astype(f32)    # [128, MM] 0/1
    per_chunk = jnp.dot(z * z, csum, preferred_element_type=f32)   # [B, 128] (first CHUNKS lanes)
    ssq = jnp.dot(per_chunk, cbc, preferred_element_type=f32)      # [B, MM] per-chunk ||.||^2
    z = z * jax.lax.rsqrt(jnp.maximum(ssq, 1e-24))       # == z / max(||z||, 1e-12)

    lout_w = w_ref[OFF_LOUTW:OFF_LOUTW + MM, :]
    lout_b = b_ref[OFF_LOUTB:OFF_LOUTB + 1, :]
    fused = jnp.dot(z.astype(bf16), lout_w, preferred_element_type=f32) + lout_b  # [B, F]

    # dropout(p=0.5) is identity at inference; fc3 padded to 128 lanes for a
    # lane-dense output store (wrapper slices back to NC).
    fc3_w = w_ref[OFF_FC3W:OFF_FC3W + F, :]
    fc3_b = b_ref[OFF_FC3B:OFF_FC3B + 1, :]
    logits = jnp.dot(fused.astype(bf16), fc3_w, preferred_element_type=f32) + fc3_b
    out_ref[...] = jnp.maximum(logits, 0.0)              # relu, [B, 128]


def fused_forward(w_slab, b_slab, ids_all, mask_all):
    out = pl.pallas_call(
        fused_kernel,
        out_shape=jax.ShapeDtypeStruct((B, OUT_PAD), jnp.float32),
        in_specs=[pl.BlockSpec(memory_space=pltpu.MemorySpace.VMEM)] * 4,
        out_specs=pl.BlockSpec(memory_space=pltpu.MemorySpace.VMEM),
        # Grid-less: everything (~0.6 MB bf16 weights + 36 KB biases) is VMEM
        # resident at toy dims. TODO(synk): at prod dims add a "parallel"
        # feature-tiled grid (v7x: 2 TCs) + vmem_limit_bytes + Buffered(2-3).
    )(ids_all, mask_all, w_slab, b_slab)
    return out[:, :NC]


# --------------------------------------------------------------------------
# Parameter init (deterministic, synthetic) + host-side slab packing
# --------------------------------------------------------------------------
def init_params(key):
    keys = iter(jax.random.split(key, 24))

    def w(shape, scale=0.05):
        return np.asarray(scale * jax.random.normal(next(keys), shape), dtype=np.float32)

    word_emb = w((VOCAB, H)); pos_emb = w((S, H))
    pool_w = w((H, H)); pool_b = w((1, H))
    fc1_w = w((H, F)); fc1_b = w((1, F))
    fc2_w = w((H, F)); fc2_b = w((1, F))
    l0_w = w((F, MM)); l0_b = w((1, MM))      # Block linear0 (entity stream)
    l1_w = w((F, MM)); l1_b = w((1, MM))      # Block linear1 (text stream)
    m0_w = w((CHUNKS, CS, RS)); m0_b = w((CHUNKS, RS))   # merge_linears0 (entity)
    m1_w = w((CHUNKS, CS, RS)); m1_b = w((CHUNKS, RS))   # merge_linears1 (text)
    lout_w = w((MM, F)); lout_b = w((1, F))
    fc3_w = w((F, NC)); fc3_b = w((1, NC))

    # ---- bf16 weight slab ----
    Ws = np.zeros((W_ROWS, 128), np.float32)
    Ws[OFF_WEMB:OFF_WEMB + VOCAB] = word_emb
    Ws[OFF_POSEMB:OFF_POSEMB + S] = pos_emb
    Ws[OFF_POOLW:OFF_POOLW + H] = pool_w
    Ws[OFF_FCW:OFF_FCW + H] = fc1_w                      # text rows
    Ws[OFF_FCW + H:OFF_FCW + 2 * H] = fc2_w              # entity rows
    Ws[OFF_LW:OFF_LW + F] = l1_w                         # text rows -> linear1
    Ws[OFF_LW + F:OFF_LW + 2 * F] = l0_w                 # entity rows -> linear0
    for r in range(RANK):                                # per-rank merge weight slices
        base = OFF_MERGEW + r * 2 * MM
        for c in range(CHUNKS):
            Ws[base + c * CS:base + (c + 1) * CS,
               c * CS:(c + 1) * CS] = m1_w[c][:, r * CS:(r + 1) * CS]           # text
            Ws[base + MM + c * CS:base + MM + (c + 1) * CS,
               c * CS:(c + 1) * CS] = m0_w[c][:, r * CS:(r + 1) * CS]           # entity
    for c in range(CHUNKS):                              # factored per-chunk L2-norm constants
        Ws[OFF_CSUM + c * CS:OFF_CSUM + (c + 1) * CS, c] = 1.0
        Ws[OFF_CBC + c, c * CS:(c + 1) * CS] = 1.0
    Ws[OFF_LOUTW:OFF_LOUTW + MM] = lout_w
    Ws[OFF_FC3W:OFF_FC3W + F, :NC] = fc3_w               # lane-padded to 128

    # ---- f32 bias slab (per-row biases for the stacked [NB, .] batch) ----
    Bs = np.zeros((B_ROWS, 128), np.float32)
    Bs[OFF_POOLB] = pool_b[0]
    Bs[OFF_FCB:OFF_FCB + B] = fc1_b                      # text rows
    Bs[OFF_FCB + B:OFF_FCB + NB] = fc2_b                 # entity rows
    Bs[OFF_LB:OFF_LB + B] = l1_b
    Bs[OFF_LB + B:OFF_LB + NB] = l0_b
    for r in range(RANK):
        base = OFF_MB + r * 8
        Bs[base:base + B] = m1_b[:, r * CS:(r + 1) * CS].reshape(MM)
        Bs[base + B:base + NB] = m0_b[:, r * CS:(r + 1) * CS].reshape(MM)
    Bs[OFF_LOUTB] = lout_b[0]
    Bs[OFF_FC3B, :NC] = fc3_b[0]

    return {"w_slab": jnp.asarray(Ws, dtype=jnp.bfloat16),
            "b_slab": jnp.asarray(Bs, dtype=jnp.float32)}


# --------------------------------------------------------------------------
# Forward pass: one jit, one Pallas kernel
# --------------------------------------------------------------------------
@jax.jit
def forward(params, input_id, mask, input_id_entity, mask_entity):
    # The PyTorch module runs self.bert on BOTH inputs (self.entity is unused),
    # so embedding/pooler params are shared; stack the two streams so the shared
    # path and the whole fusion head run once inside the single fused kernel.
    ids_all = jnp.concatenate([input_id, input_id_entity], axis=0).astype(jnp.int32)
    mask_all = jnp.concatenate([mask, mask_entity], axis=0).astype(jnp.float32)
    return fused_forward(params["w_slab"], params["b_slab"], ids_all, mask_all)


if __name__ == "__main__":
    key = jax.random.PRNGKey(0)
    pkey, k1, k2 = jax.random.split(key, 3)
    params = init_params(pkey)

    input_id = jax.random.randint(k1, (B, S), 0, VOCAB, dtype=jnp.int32)
    input_id_entity = jax.random.randint(k2, (B, S), 0, VOCAB, dtype=jnp.int32)
    mask = jnp.array([[1, 1, 1, 1, 1, 1, 0, 0],
                      [1, 1, 1, 1, 1, 1, 1, 1]], dtype=jnp.float32)
    mask_entity = jnp.array([[1, 1, 1, 0, 0, 0, 0, 0],
                             [1, 1, 1, 1, 1, 0, 0, 0]], dtype=jnp.float32)

    out = forward(params, input_id, mask, input_id_entity, mask_entity)
    out = jax.block_until_ready(out)
    assert out.shape == (B, NC) and out.dtype == jnp.float32
    assert bool(jnp.all(jnp.isfinite(out)))
    print("KERNEL_OK")
</pallas_src>

<mosaic_0001>
module attributes {stable_mosaic.version = 11 : i64} {
  func.func @fused_kernel(%arg0: memref<4x8xi32, #tpu.memory_space<vmem>>, %arg1: memref<4x8xf32, #tpu.memory_space<vmem>>, %arg2: memref<2320x128xbf16, #tpu.memory_space<vmem>>, %arg3: memref<72x128xf32, #tpu.memory_space<vmem>>, %arg4: memref<2x128xf32, #tpu.memory_space<vmem>>) attributes {dimension_semantics = [], scalar_prefetch = 0 : i64, scratch_operands = 0 : i64, tpu.core_type = #tpu.core_type<tc>} {
    %c0 = arith.constant 0 : index
    %c0_0 = arith.constant 0 : index
    %0 = vector.load %arg0[%c0, %c0_0] : memref<4x8xi32, #tpu.memory_space<vmem>>, vector<4x8xi32>
    %c0_1 = arith.constant 0 : index
    %c0_2 = arith.constant 0 : index
    %1 = vector.load %arg1[%c0_1, %c0_2] : memref<4x8xf32, #tpu.memory_space<vmem>>, vector<4x8xf32>
    %2 = tpu.iota {dimensions = array<i32: 1>} : vector<4x128xi32>
    %cst = arith.constant 0.000000e+00 : f32
    %3 = vector.broadcast %cst : f32 to vector<4x128xf32>
    %4 = vector.extract_strided_slice %1 {offsets = [0, 0], sizes = [4, 1], strides = [1, 1]} : vector<4x8xf32> to vector<4x1xf32>
    %5 = vector.extract_strided_slice %0 {offsets = [0, 0], sizes = [4, 1], strides = [1, 1]} : vector<4x8xi32> to vector<4x1xi32>
    %6 = vector.broadcast %5 : vector<4x1xi32> to vector<4x128xi32>
    %7 = arith.cmpi eq, %6, %2 : vector<4x128xi32>
    %8 = arith.extui %7 : vector<4x128xi1> to vector<4x128xi32>
    %9 = arith.sitofp %8 : vector<4x128xi32> to vector<4x128xf32>
    %10 = vector.broadcast %4 : vector<4x1xf32> to vector<4x128xf32>
    %11 = arith.mulf %10, %9 : vector<4x128xf32>
    %12 = arith.addf %3, %11 : vector<4x128xf32>
    %13 = vector.extract_strided_slice %1 {offsets = [0, 1], sizes = [4, 1], strides = [1, 1]} : vector<4x8xf32> to vector<4x1xf32>
    %14 = vector.extract_strided_slice %0 {offsets = [0, 1], sizes = [4, 1], strides = [1, 1]} : vector<4x8xi32> to vector<4x1xi32>
    %15 = vector.broadcast %14 : vector<4x1xi32> to vector<4x128xi32>
    %16 = arith.cmpi eq, %15, %2 : vector<4x128xi32>
    %17 = arith.extui %16 : vector<4x128xi1> to vector<4x128xi32>
    %18 = arith.sitofp %17 : vector<4x128xi32> to vector<4x128xf32>
    %19 = vector.broadcast %13 : vector<4x1xf32> to vector<4x128xf32>
    %20 = arith.mulf %19, %18 : vector<4x128xf32>
    %21 = arith.addf %12, %20 : vector<4x128xf32>
    %22 = vector.extract_strided_slice %1 {offsets = [0, 2], sizes = [4, 1], strides = [1, 1]} : vector<4x8xf32> to vector<4x1xf32>
    %23 = vector.extract_strided_slice %0 {offsets = [0, 2], sizes = [4, 1], strides = [1, 1]} : vector<4x8xi32> to vector<4x1xi32>
    %24 = vector.broadcast %23 : vector<4x1xi32> to vector<4x128xi32>
    %25 = arith.cmpi eq, %24, %2 : vector<4x128xi32>
    %26 = arith.extui %25 : vector<4x128xi1> to vector<4x128xi32>
    %27 = arith.sitofp %26 : vector<4x128xi32> to vector<4x128xf32>
    %28 = vector.broadcast %22 : vector<4x1xf32> to vector<4x128xf32>
    %29 = arith.mulf %28, %27 : vector<4x128xf32>
    %30 = arith.addf %21, %29 : vector<4x128xf32>
    %31 = vector.extract_strided_slice %1 {offsets = [0, 3], sizes = [4, 1], strides = [1, 1]} : vector<4x8xf32> to vector<4x1xf32>
    %32 = vector.extract_strided_slice %0 {offsets = [0, 3], sizes = [4, 1], strides = [1, 1]} : vector<4x8xi32> to vector<4x1xi32>
    %33 = vector.broadcast %32 : vector<4x1xi32> to vector<4x128xi32>
    %34 = arith.cmpi eq, %33, %2 : vector<4x128xi32>
    %35 = arith.extui %34 : vector<4x128xi1> to vector<4x128xi32>
    %36 = arith.sitofp %35 : vector<4x128xi32> to vector<4x128xf32>
    %37 = vector.broadcast %31 : vector<4x1xf32> to vector<4x128xf32>
    %38 = arith.mulf %37, %36 : vector<4x128xf32>
    %39 = arith.addf %30, %38 : vector<4x128xf32>
    %40 = vector.extract_strided_slice %1 {offsets = [0, 4], sizes = [4, 1], strides = [1, 1]} : vector<4x8xf32> to vector<4x1xf32>
    %41 = vector.extract_strided_slice %0 {offsets = [0, 4], sizes = [4, 1], strides = [1, 1]} : vector<4x8xi32> to vector<4x1xi32>
    %42 = vector.broadcast %41 : vector<4x1xi32> to vector<4x128xi32>
    %43 = arith.cmpi eq, %42, %2 : vector<4x128xi32>
    %44 = arith.extui %43 : vector<4x128xi1> to vector<4x128xi32>
    %45 = arith.sitofp %44 : vector<4x128xi32> to vector<4x128xf32>
    %46 = vector.broadcast %40 : vector<4x1xf32> to vector<4x128xf32>
    %47 = arith.mulf %46, %45 : vector<4x128xf32>
    %48 = arith.addf %39, %47 : vector<4x128xf32>
    %49 = vector.extract_strided_slice %1 {offsets = [0, 5], sizes = [4, 1], strides = [1, 1]} : vector<4x8xf32> to vector<4x1xf32>
    %50 = vector.extract_strided_slice %0 {offsets = [0, 5], sizes = [4, 1], strides = [1, 1]} : vector<4x8xi32> to vector<4x1xi32>
    %51 = vector.broadcast %50 : vector<4x1xi32> to vector<4x128xi32>
    %52 = arith.cmpi eq, %51, %2 : vector<4x128xi32>
    %53 = arith.extui %52 : vector<4x128xi1> to vector<4x128xi32>
    %54 = arith.sitofp %53 : vector<4x128xi32> to vector<4x128xf32>
    %55 = vector.broadcast %49 : vector<4x1xf32> to vector<4x128xf32>
    %56 = arith.mulf %55, %54 : vector<4x128xf32>
    %57 = arith.addf %48, %56 : vector<4x128xf32>
    %58 = vector.extract_strided_slice %1 {offsets = [0, 6], sizes = [4, 1], strides = [1, 1]} : vector<4x8xf32> to vector<4x1xf32>
    %59 = vector.extract_strided_slice %0 {offsets = [0, 6], sizes = [4, 1], strides = [1, 1]} : vector<4x8xi32> to vector<4x1xi32>
    %60 = vector.broadcast %59 : vector<4x1xi32> to vector<4x128xi32>
    %61 = arith.cmpi eq, %60, %2 : vector<4x128xi32>
    %62 = arith.extui %61 : vector<4x128xi1> to vector<4x128xi32>
    %63 = arith.sitofp %62 : vector<4x128xi32> to vector<4x128xf32>
    %64 = vector.broadcast %58 : vector<4x1xf32> to vector<4x128xf32>
    %65 = arith.mulf %64, %63 : vector<4x128xf32>
    %66 = arith.addf %57, %65 : vector<4x128xf32>
    %67 = vector.extract_strided_slice %1 {offsets = [0, 7], sizes = [4, 1], strides = [1, 1]} : vector<4x8xf32> to vector<4x1xf32>
    %68 = vector.extract_strided_slice %0 {offsets = [0, 7], sizes = [4, 1], strides = [1, 1]} : vector<4x8xi32> to vector<4x1xi32>
    %69 = vector.broadcast %68 : vector<4x1xi32> to vector<4x128xi32>
    %70 = arith.cmpi eq, %69, %2 : vector<4x128xi32>
    %71 = arith.extui %70 : vector<4x128xi1> to vector<4x128xi32>
    %72 = arith.sitofp %71 : vector<4x128xi32> to vector<4x128xf32>
    %73 = vector.broadcast %67 : vector<4x1xf32> to vector<4x128xf32>
    %74 = arith.mulf %73, %72 : vector<4x128xf32>
    %75 = arith.addf %66, %74 : vector<4x128xf32>
    %c0_3 = arith.constant 0 : index
    %c0_4 = arith.constant 0 : index
    %76 = vector.load %arg2[%c0_3, %c0_4] : memref<2320x128xbf16, #tpu.memory_space<vmem>>, vector<128x128xbf16>
    %c128 = arith.constant 128 : index
    %c0_5 = arith.constant 0 : index
    %77 = vector.load %arg2[%c128, %c0_5] : memref<2320x128xbf16, #tpu.memory_space<vmem>>, vector<8x128xbf16>
    %78 = arith.truncf %75 : vector<4x128xf32> to vector<4x128xbf16>
    %cst_6 = arith.constant dense<0.000000e+00> : vector<4x128xf32>
    %79 = tpu.matmul %78, %76, %cst_6 {dimension_numbers = #tpu.dot_dimension_numbers<[1], [0], [0], [1], [0, 0, 1, 1], [], []>} : vector<4x128xbf16>, vector<128x128xbf16>, vector<4x128xf32> -> vector<4x128xf32>
    %80 = arith.truncf %1 : vector<4x8xf32> to vector<4x8xbf16>
    %cst_7 = arith.constant dense<0.000000e+00> : vector<4x128xf32>
    %81 = tpu.matmul %80, %77, %cst_7 {dimension_numbers = #tpu.dot_dimension_numbers<[1], [0], [0], [1], [0, 0, 1, 1], [], []>} : vector<4x8xbf16>, vector<8x128xbf16>, vector<4x128xf32> -> vector<4x128xf32>
    %82 = arith.addf %79, %81 : vector<4x128xf32>
    %cst_8 = arith.constant dense<0.000000e+00> : vector<4xf32>
    %83 = vector.multi_reduction <add>, %1, %cst_8 [1] : vector<4x8xf32> to vector<4xf32>
    %84 = vector.shape_cast %83 : vector<4xf32> to vector<4x1xf32>
    %cst_9 = arith.constant 1.000000e+00 : f32
    %85 = vector.broadcast %cst_9 : f32 to vector<4x1xf32>
    %86 = arith.maximumf %84, %85 : vector<4x1xf32>
    %87 = vector.broadcast %86 : vector<4x1xf32> to vector<4x128xf32>
    %88 = arith.divf %82, %87 : vector<4x128xf32>
    %c144 = arith.constant 144 : index
    %c0_10 = arith.constant 0 : index
    %89 = vector.load %arg2[%c144, %c0_10] : memref<2320x128xbf16, #tpu.memory_space<vmem>>, vector<128x128xbf16>
    %c0_11 = arith.constant 0 : index
    %c0_12 = arith.constant 0 : index
    %90 = vector.load %arg3[%c0_11, %c0_12] : memref<72x128xf32, #tpu.memory_space<vmem>>, vector<1x128xf32>
    %91 = arith.truncf %88 : vector<4x128xf32> to vector<4x128xbf16>
    %cst_13 = arith.constant dense<0.000000e+00> : vector<4x128xf32>
    %92 = tpu.matmul %91, %89, %cst_13 {dimension_numbers = #tpu.dot_dimension_numbers<[1], [0], [0], [1], [0, 0, 1, 1], [], []>} : vector<4x128xbf16>, vector<128x128xbf16>, vector<4x128xf32> -> vector<4x128xf32>
    %93 = vector.broadcast %90 : vector<1x128xf32> to vector<4x128xf32>
    %94 = arith.addf %92, %93 : vector<4x128xf32>
    %95 = math.tanh %94 : vector<4x128xf32>
    %96 = tpu.iota {dimensions = array<i32: 0>} : vector<4x1xi32>
    %c2_i32 = arith.constant 2 : i32
    %97 = vector.broadcast %c2_i32 : i32 to vector<4x1xi32>
    %98 = arith.cmpi slt, %96, %97 : vector<4x1xi32>
    %99 = arith.extui %98 : vector<4x1xi1> to vector<4x1xi32>
    %100 = arith.sitofp %99 : vector<4x1xi32> to vector<4x1xf32>
    %cst_14 = arith.constant 1.000000e+00 : f32
    %101 = vector.broadcast %cst_14 : f32 to vector<4x1xf32>
    %102 = arith.subf %101, %100 : vector<4x1xf32>
    %c8 = arith.constant 8 : index
    %c0_15 = arith.constant 0 : index
    %103 = vector.load %arg3[%c8, %c0_15] : memref<72x128xf32, #tpu.memory_space<vmem>>, vector<4x128xf32>
    %104 = vector.broadcast %100 : vector<4x1xf32> to vector<4x128xf32>
    %105 = arith.mulf %95, %104 : vector<4x128xf32>
    %106 = vector.broadcast %102 : vector<4x1xf32> to vector<4x128xf32>
    %107 = arith.mulf %95, %106 : vector<4x128xf32>
    %108 = tpu.concatenate %105, %107 in 1 : vector<4x128xf32>, vector<4x128xf32> -> vector<4x256xf32>
    %109 = arith.truncf %108 : vector<4x256xf32> to vector<4x256xbf16>
    %c272 = arith.constant 272 : index
    %c0_16 = arith.constant 0 : index
    %110 = vector.load %arg2[%c272, %c0_16] : memref<2320x128xbf16, #tpu.memory_space<vmem>>, vector<256x128xbf16>
    %cst_17 = arith.constant dense<0.000000e+00> : vector<4x128xf32>
    %111 = tpu.matmul %109, %110, %cst_17 {dimension_numbers = #tpu.dot_dimension_numbers<[1], [0], [0], [1], [0, 0, 1, 1], [], []>} : vector<4x256xbf16>, vector<256x128xbf16>, vector<4x128xf32> -> vector<4x128xf32>
    %112 = arith.addf %111, %103 : vector<4x128xf32>
    %c16 = arith.constant 16 : index
    %c0_18 = arith.constant 0 : index
    %113 = vector.load %arg3[%c16, %c0_18] : memref<72x128xf32, #tpu.memory_space<vmem>>, vector<4x128xf32>
    %114 = vector.broadcast %100 : vector<4x1xf32> to vector<4x128xf32>
    %115 = arith.mulf %112, %114 : vector<4x128xf32>
    %116 = vector.broadcast %102 : vector<4x1xf32> to vector<4x128xf32>
    %117 = arith.mulf %112, %116 : vector<4x128xf32>
    %118 = tpu.concatenate %115, %117 in 1 : vector<4x128xf32>, vector<4x128xf32> -> vector<4x256xf32>
    %119 = arith.truncf %118 : vector<4x256xf32> to vector<4x256xbf16>
    %c528 = arith.constant 528 : index
    %c0_19 = arith.constant 0 : index
    %120 = vector.load %arg2[%c528, %c0_19] : memref<2320x128xbf16, #tpu.memory_space<vmem>>, vector<256x128xbf16>
    %cst_20 = arith.constant dense<0.000000e+00> : vector<4x128xf32>
    %121 = tpu.matmul %119, %120, %cst_20 {dimension_numbers = #tpu.dot_dimension_numbers<[1], [0], [0], [1], [0, 0, 1, 1], [], []>} : vector<4x256xbf16>, vector<256x128xbf16>, vector<4x128xf32> -> vector<4x128xf32>
    %122 = arith.addf %121, %113 : vector<4x128xf32>
    %123 = vector.broadcast %100 : vector<4x1xf32> to vector<4x128xf32>
    %124 = arith.mulf %122, %123 : vector<4x128xf32>
    %125 = vector.broadcast %102 : vector<4x1xf32> to vector<4x128xf32>
    %126 = arith.mulf %122, %125 : vector<4x128xf32>
    %127 = tpu.concatenate %124, %126 in 1 : vector<4x128xf32>, vector<4x128xf32> -> vector<4x256xf32>
    %128 = arith.truncf %127 : vector<4x256xf32> to vector<4x256xbf16>
    %cst_21 = arith.constant 0.000000e+00 : f32
    %129 = vector.broadcast %cst_21 : f32 to vector<2x128xf32>
    %c784 = arith.constant 784 : index
    %c0_22 = arith.constant 0 : index
    %130 = vector.load %arg2[%c784, %c0_22] : memref<2320x128xbf16, #tpu.memory_space<vmem>>, vector<256x128xbf16>
    %c24 = arith.constant 24 : index
    %c0_23 = arith.constant 0 : index
    %131 = vector.load %arg3[%c24, %c0_23] : memref<72x128xf32, #tpu.memory_space<vmem>>, vector<4x128xf32>
    %cst_24 = arith.constant dense<0.000000e+00> : vector<4x128xf32>
    %132 = tpu.matmul %128, %130, %cst_24 {dimension_numbers = #tpu.dot_dimension_numbers<[1], [0], [0], [1], [0, 0, 1, 1], [], []>} : vector<4x256xbf16>, vector<256x128xbf16>, vector<4x128xf32> -> vector<4x128xf32>
    %133 = arith.addf %132, %131 : vector<4x128xf32>
    %134 = vector.extract_strided_slice %133 {offsets = [0, 0], sizes = [2, 128], strides = [1, 1]} : vector<4x128xf32> to vector<2x128xf32>
    %135 = vector.extract_strided_slice %133 {offsets = [2, 0], sizes = [2, 128], strides = [1, 1]} : vector<4x128xf32> to vector<2x128xf32>
    %136 = arith.mulf %134, %135 : vector<2x128xf32>
    %137 = arith.addf %129, %136 : vector<2x128xf32>
    %c1040 = arith.constant 1040 : index
    %c0_25 = arith.constant 0 : index
    %138 = vector.load %arg2[%c1040, %c0_25] : memref<2320x128xbf16, #tpu.memory_space<vmem>>, vector<256x128xbf16>
    %c32 = arith.constant 32 : index
    %c0_26 = arith.constant 0 : index
    %139 = vector.load %arg3[%c32, %c0_26] : memref<72x128xf32, #tpu.memory_space<vmem>>, vector<4x128xf32>
    %cst_27 = arith.constant dense<0.000000e+00> : vector<4x128xf32>
    %140 = tpu.matmul %128, %138, %cst_27 {dimension_numbers = #tpu.dot_dimension_numbers<[1], [0], [0], [1], [0, 0, 1, 1], [], []>} : vector<4x256xbf16>, vector<256x128xbf16>, vector<4x128xf32> -> vector<4x128xf32>
    %141 = arith.addf %140, %139 : vector<4x128xf32>
    %142 = vector.extract_strided_slice %141 {offsets = [0, 0], sizes = [2, 128], strides = [1, 1]} : vector<4x128xf32> to vector<2x128xf32>
    %143 = vector.extract_strided_slice %141 {offsets = [2, 0], sizes = [2, 128], strides = [1, 1]} : vector<4x128xf32> to vector<2x128xf32>
    %144 = arith.mulf %142, %143 : vector<2x128xf32>
    %145 = arith.addf %137, %144 : vector<2x128xf32>
    %c1296 = arith.constant 1296 : index
    %c0_28 = arith.constant 0 : index
    %146 = vector.load %arg2[%c1296, %c0_28] : memref<2320x128xbf16, #tpu.memory_space<vmem>>, vector<256x128xbf16>
    %c40 = arith.constant 40 : index
    %c0_29 = arith.constant 0 : index
    %147 = vector.load %arg3[%c40, %c0_29] : memref<72x128xf32, #tpu.memory_space<vmem>>, vector<4x128xf32>
    %cst_30 = arith.constant dense<0.000000e+00> : vector<4x128xf32>
    %148 = tpu.matmul %128, %146, %cst_30 {dimension_numbers = #tpu.dot_dimension_numbers<[1], [0], [0], [1], [0, 0, 1, 1], [], []>} : vector<4x256xbf16>, vector<256x128xbf16>, vector<4x128xf32> -> vector<4x128xf32>
    %149 = arith.addf %148, %147 : vector<4x128xf32>
    %150 = vector.extract_strided_slice %149 {offsets = [0, 0], sizes = [2, 128], strides = [1, 1]} : vector<4x128xf32> to vector<2x128xf32>
    %151 = vector.extract_strided_slice %149 {offsets = [2, 0], sizes = [2, 128], strides = [1, 1]} : vector<4x128xf32> to vector<2x128xf32>
    %152 = arith.mulf %150, %151 : vector<2x128xf32>
    %153 = arith.addf %145, %152 : vector<2x128xf32>
    %c1552 = arith.constant 1552 : index
    %c0_31 = arith.constant 0 : index
    %154 = vector.load %arg2[%c1552, %c0_31] : memref<2320x128xbf16, #tpu.memory_space<vmem>>, vector<256x128xbf16>
    %c48 = arith.constant 48 : index
    %c0_32 = arith.constant 0 : index
    %155 = vector.load %arg3[%c48, %c0_32] : memref<72x128xf32, #tpu.memory_space<vmem>>, vector<4x128xf32>
    %cst_33 = arith.constant dense<0.000000e+00> : vector<4x128xf32>
    %156 = tpu.matmul %128, %154, %cst_33 {dimension_numbers = #tpu.dot_dimension_numbers<[1], [0], [0], [1], [0, 0, 1, 1], [], []>} : vector<4x256xbf16>, vector<256x128xbf16>, vector<4x128xf32> -> vector<4x128xf32>
    %157 = arith.addf %156, %155 : vector<4x128xf32>
    %158 = vector.extract_strided_slice %157 {offsets = [0, 0], sizes = [2, 128], strides = [1, 1]} : vector<4x128xf32> to vector<2x128xf32>
    %159 = vector.extract_strided_slice %157 {offsets = [2, 0], sizes = [2, 128], strides = [1, 1]} : vector<4x128xf32> to vector<2x128xf32>
    %160 = arith.mulf %158, %159 : vector<2x128xf32>
    %161 = arith.addf %153, %160 : vector<2x128xf32>
    %162 = math.absf %161 : vector<2x128xf32>
    %163 = math.sqrt %162 : vector<2x128xf32>
    %cst_34 = arith.constant 0.000000e+00 : f32
    %164 = vector.broadcast %cst_34 : f32 to vector<2x128xf32>
    %165 = arith.cmpf oge, %161, %164 : vector<2x128xf32>
    %cst_35 = arith.constant 0.000000e+00 : f32
    %166 = vector.broadcast %cst_35 : f32 to vector<2x128xf32>
    %167 = arith.subf %166, %163 : vector<2x128xf32>
    %168 = arith.select %165, %163, %167 : vector<2x128xi1>, vector<2x128xf32>
    %c1808 = arith.constant 1808 : index
    %c0_36 = arith.constant 0 : index
    %169 = vector.load %arg2[%c1808, %c0_36] : memref<2320x128xbf16, #tpu.memory_space<vmem>>, vector<128x128xbf16>
    %170 = arith.extf %169 : vector<128x128xbf16> to vector<128x128xf32>
    %c1936 = arith.constant 1936 : index
    %c0_37 = arith.constant 0 : index
    %171 = vector.load %arg2[%c1936, %c0_37] : memref<2320x128xbf16, #tpu.memory_space<vmem>>, vector<128x128xbf16>
    %172 = arith.extf %171 : vector<128x128xbf16> to vector<128x128xf32>
    %173 = arith.mulf %168, %168 : vector<2x128xf32>
    %cst_38 = arith.constant dense<0.000000e+00> : vector<2x128xf32>
    %174 = tpu.matmul %173, %170, %cst_38 {dimension_numbers = #tpu.dot_dimension_numbers<[1], [0], [0], [1], [0, 0, 1, 1], [], []>} : vector<2x128xf32>, vector<128x128xf32>, vector<2x128xf32> -> vector<2x128xf32>
    %cst_39 = arith.constant dense<0.000000e+00> : vector<2x128xf32>
    %175 = tpu.matmul %174, %172, %cst_39 {dimension_numbers = #tpu.dot_dimension_numbers<[1], [0], [0], [1], [0, 0, 1, 1], [], []>} : vector<2x128xf32>, vector<128x128xf32>, vector<2x128xf32> -> vector<2x128xf32>
    %cst_40 = arith.constant 1.000000e-24 : f32
    %176 = vector.broadcast %cst_40 : f32 to vector<2x128xf32>
    %177 = arith.maximumf %175, %176 : vector<2x128xf32>
    %178 = math.rsqrt %177 : vector<2x128xf32>
    %179 = arith.mulf %168, %178 : vector<2x128xf32>
    %c2064 = arith.constant 2064 : index
    %c0_41 = arith.constant 0 : index
    %180 = vector.load %arg2[%c2064, %c0_41] : memref<2320x128xbf16, #tpu.memory_space<vmem>>, vector<128x128xbf16>
    %c56 = arith.constant 56 : index
    %c0_42 = arith.constant 0 : index
    %181 = vector.load %arg3[%c56, %c0_42] : memref<72x128xf32, #tpu.memory_space<vmem>>, vector<1x128xf32>
    %182 = arith.truncf %179 : vector<2x128xf32> to vector<2x128xbf16>
    %cst_43 = arith.constant dense<0.000000e+00> : vector<2x128xf32>
    %183 = tpu.matmul %182, %180, %cst_43 {dimension_numbers = #tpu.dot_dimension_numbers<[1], [0], [0], [1], [0, 0, 1, 1], [], []>} : vector<2x128xbf16>, vector<128x128xbf16>, vector<2x128xf32> -> vector<2x128xf32>
    %184 = vector.broadcast %181 : vector<1x128xf32> to vector<2x128xf32>
    %185 = arith.addf %183, %184 : vector<2x128xf32>
    %c2192 = arith.constant 2192 : index
    %c0_44 = arith.constant 0 : index
    %186 = vector.load %arg2[%c2192, %c0_44] : memref<2320x128xbf16, #tpu.memory_space<vmem>>, vector<128x128xbf16>
    %c64 = arith.constant 64 : index
    %c0_45 = arith.constant 0 : index
    %187 = vector.load %arg3[%c64, %c0_45] : memref<72x128xf32, #tpu.memory_space<vmem>>, vector<1x128xf32>
    %188 = arith.truncf %185 : vector<2x128xf32> to vector<2x128xbf16>
    %cst_46 = arith.constant dense<0.000000e+00> : vector<2x128xf32>
    %189 = tpu.matmul %188, %186, %cst_46 {dimension_numbers = #tpu.dot_dimension_numbers<[1], [0], [0], [1], [0, 0, 1, 1], [], []>} : vector<2x128xbf16>, vector<128x128xbf16>, vector<2x128xf32> -> vector<2x128xf32>
    %190 = vector.broadcast %187 : vector<1x128xf32> to vector<2x128xf32>
    %191 = arith.addf %189, %190 : vector<2x128xf32>
    %cst_47 = arith.constant 0.000000e+00 : f32
    %192 = vector.broadcast %cst_47 : f32 to vector<2x128xf32>
    %193 = arith.maximumf %191, %192 : vector<2x128xf32>
    %c0_48 = arith.constant 0 : index
    %c0_49 = arith.constant 0 : index
    %194 = vector.load %arg4[%c0_48, %c0_49] : memref<2x128xf32, #tpu.memory_space<vmem>>, vector<2x128xf32>
    tpu.vector_store %arg4[%c0_48, %c0_49], %193 {strides = array<i32>} : memref<2x128xf32, #tpu.memory_space<vmem>>, vector<2x128xf32>,
    return
  }
}

</mosaic_0001>

<llo_original>
// kernel: forward.1
$region0: #{forward.1}
  #allocation0 [shape = 'u32[]', space=smem, size = 0x4, offset = 0x4, fixed_abs, tag = 'smem constant byte address 0x4 - core index']
  #allocation1 [shape = 'u32[72,128]{1,0:T(1,128)}', space=vmem, size = 0x9000, scoped, tag = 'internal scratch']
  %s0 = inlined_call_operand.vmem [shape: s32[4,8], index: 0, kind: input, shape index: {}]
  %s1 = inlined_call_operand.vmem [shape: f32[4,8], index: 1, kind: input, shape index: {}]
  %s2 = inlined_call_operand.hbm [shape: bf16[2320,128], index: 2, kind: input, shape index: {}]
  %s3 = inlined_call_operand.hbm [shape: f32[72,128], index: 3, kind: input, shape index: {}]
  %s4 = inlined_call_operand.hbm [shape: f32[2,128], index: 4, kind: output, shape index: {}]
  %s5 = sld [smem:[#allocation0]]
  $region34: #{forward.1} parent=0
    _
  %s7 = ssub.s32 1, %s5
  %s8 = scalar_select 0, %s7, %s5
  $region1: #{forward.1} parent=0
    #allocation2 [shape = 'u8[593920]{0}', space=vmem, size = 0x91000, scoped, tag = 'input window, operand 2, single buffered']
    #allocation3 [shape = 's32[1]{0}', space=sflag, size = 0x4, scoped, tag = 'scoped memory for forward.1']
    #allocation4 [shape = 's32[1]{0}', space=sflag, size = 0x4, scoped, tag = 'scoped memory for forward.1']
    #allocation5 [shape = 'u8[36864]{0}', space=vmem, size = 0x9000, scoped, tag = 'input window, operand 3, single buffered']
    #allocation6 [shape = 's32[1]{0}', space=sflag, size = 0x4, scoped, tag = 'scoped memory for forward.1']
    #allocation7 [shape = 'u8[1024]{0}', space=vmem, size = 0x400, scoped, tag = 'output window, operand 0, single buffered']
    %9 = vsyncpa [#allocation3], 0
    %10 = vsyncpa [#allocation6], 0
    %11 = vsyncpa [#allocation4], 0
    // Predicated region
    $region2: #{forward.1} parent=1 // pred_check
      _
    $region3: #{forward.1} parent=1 // pred_check_branch
      %13 = sbr.rel (0) target = $region5
    $region4: #{forward.1} parent=1 // pred_region
      _
    $region5: #{forward.1} parent=1 // pred_fallthru
      _
    // Predicated region
    $region6: #{forward.1} parent=1 // pred_check
      _
    $region7: #{forward.1} parent=1 // pred_check_branch
      %15 = sbr.rel (0) target = $region9
    $region8: #{forward.1} parent=1 // pred_region
      _
    $region9: #{forward.1} parent=1 // pred_fallthru
      _
    // Predicated region
    $region10: #{forward.1} parent=1 // pred_check
      _
    $region11: #{forward.1} parent=1 // pred_check_branch
      %17 = sbr.rel (0) target = $region13
    $region12: #{forward.1} parent=1 // pred_region
      %19 = vsyncadd [#allocation3], 0
      %s20 = sshll.u32 %s2, 4
      %s21 = int_to_ptr.hbm [resolvable:$true] %s20
      %s22 = sshll.u32 [#allocation2], 4
      %s23 = int_to_ptr.vmem [resolvable:$true] %s22
      %28 = dma.hbm_to_vmem [thread:$0]  %s21, 18560, %s23, [#allocation3], 64, 64, 4
    $region13: #{forward.1} parent=1 // pred_fallthru
      _
    // Predicated region
    $region14: #{forward.1} parent=1 // pred_check
      _
    $region15: #{forward.1} parent=1 // pred_check_branch
      %30 = sbr.rel (0) target = $region17
    $region16: #{forward.1} parent=1 // pred_region
      %32 = vsyncadd [#allocation6], 0
      %s33 = sshll.u32 %s3, 4
      %s34 = int_to_ptr.hbm [resolvable:$true] %s33
      %s35 = sshll.u32 [#allocation5], 4
      %s36 = int_to_ptr.vmem [resolvable:$true] %s35
      %41 = dma.hbm_to_vmem [thread:$0]  %s34, 1152, %s36, [#allocation6], 128, 128, 8
    $region17: #{forward.1} parent=1 // pred_fallthru
      _
    // Predicated region
    $region18: #{forward.1} parent=1 // pred_check
      _
    $region19: #{forward.1} parent=1 // pred_check_branch
      %43 = sbr.rel (0) target = $region21
    $region20: #{forward.1} parent=1 // pred_region
      %45 = dma.done [#allocation3], 18560
    $region21: #{forward.1} parent=1 // pred_fallthru
      _
    // Predicated region
    $region22: #{forward.1} parent=1 // pred_check
      _
    $region23: #{forward.1} parent=1 // pred_check_branch
      %47 = sbr.rel (0) target = $region25
    $region24: #{forward.1} parent=1 // pred_region
      %49 = dma.done [#allocation6], 1152
    $region25: #{forward.1} parent=1 // pred_fallthru
      _
    %v51 = vld [vmem:[%s0] sm:$0xf]
    %v52 = vld [vmem:[%s1] sm:$0xf]
    %v53 = vlaneseq
    %v54 = vand.u32 %v53, 127
    %55 = vset.pattern.permute.xlu0 0
    %56 = vperm.xlu0 %55, %v51
    %v57 = vpop.permute.xlu0 %56
    %vm58 = vcmp.eq.s32.totalorder %v57, %v54
    %v59 = vsel %vm58, 1, 0
    %v60 = vcvt.s32.f32 %v59
    %62 = vset.pattern.permute.xlu0 0
    %63 = vperm.xlu0 %62, %v52
    %v64 = vpop.permute.xlu0 %63
    %v66 = vmul.f32 %v64, %v60
    %v67 = vadd.f32 %v66, 0.0
    %68 = vset.pattern.permute.xlu0 1
    %69 = vperm.xlu0 %68, %v51
    %v70 = vpop.permute.xlu0 %69
    %vm71 = vcmp.eq.s32.totalorder %v70, %v54
    %v72 = vsel %vm71, 1, 0
    %v73 = vcvt.s32.f32 %v72
    %74 = vset.pattern.permute.xlu0 1
    %75 = vperm.xlu0 %74, %v52
    %v76 = vpop.permute.xlu0 %75
    %v78 = vmul.f32 %v76, %v73
    %v79 = vadd.f32 %v67, %v78
    %80 = vset.pattern.permute.xlu0 2
    %81 = vperm.xlu0 %80, %v51
    %v82 = vpop.permute.xlu0 %81
    %vm83 = vcmp.eq.s32.totalorder %v82, %v54
    %v84 = vsel %vm83, 1, 0
    %v85 = vcvt.s32.f32 %v84
    %86 = vset.pattern.permute.xlu0 2
    %87 = vperm.xlu0 %86, %v52
    %v88 = vpop.permute.xlu0 %87
    %v90 = vmul.f32 %v88, %v85
    %v91 = vadd.f32 %v79, %v90
    %92 = vset.pattern.permute.xlu0 3
    %93 = vperm.xlu0 %92, %v51
    %v94 = vpop.permute.xlu0 %93
    %vm95 = vcmp.eq.s32.totalorder %v94, %v54
    %v96 = vsel %vm95, 1, 0
    %v97 = vcvt.s32.f32 %v96
    %98 = vset.pattern.permute.xlu0 3
    %99 = vperm.xlu0 %98, %v52
    %v100 = vpop.permute.xlu0 %99
    %v102 = vmul.f32 %v100, %v97
    %v103 = vadd.f32 %v91, %v102
    %104 = vset.pattern.permute.xlu0 4
    %105 = vperm.xlu0 %104, %v51
    %v106 = vpop.permute.xlu0 %105
    %vm107 = vcmp.eq.s32.totalorder %v106, %v54
    %v108 = vsel %vm107, 1, 0
    %v109 = vcvt.s32.f32 %v108
    %110 = vset.pattern.permute.xlu0 4
    %111 = vperm.xlu0 %110, %v52
    %v112 = vpop.permute.xlu0 %111
    %v114 = vmul.f32 %v112, %v109
    %v115 = vadd.f32 %v103, %v114
    %116 = vset.pattern.permute.xlu0 5
    %117 = vperm.xlu0 %116, %v51
    %v118 = vpop.permute.xlu0 %117
    %vm119 = vcmp.eq.s32.totalorder %v118, %v54
    %v120 = vsel %vm119, 1, 0
    %v121 = vcvt.s32.f32 %v120
    %122 = vset.pattern.permute.xlu0 5
    %123 = vperm.xlu0 %122, %v52
    %v124 = vpop.permute.xlu0 %123
    %v126 = vmul.f32 %v124, %v121
    %v127 = vadd.f32 %v115, %v126
    %128 = vset.pattern.permute.xlu0 6
    %129 = vperm.xlu0 %128, %v51
    %v130 = vpop.permute.xlu0 %129
    %vm131 = vcmp.eq.s32.totalorder %v130, %v54
    %v132 = vsel %vm131, 1, 0
    %v133 = vcvt.s32.f32 %v132
    %134 = vset.pattern.permute.xlu0 6
    %135 = vperm.xlu0 %134, %v52
    %v136 = vpop.permute.xlu0 %135
    %v138 = vmul.f32 %v136, %v133
    %v139 = vadd.f32 %v127, %v138
    %140 = vset.pattern.permute.xlu0 7
    %141 = vperm.xlu0 %140, %v51
    %v142 = vpop.permute.xlu0 %141
    %vm143 = vcmp.eq.s32.totalorder %v142, %v54
    %v144 = vsel %vm143, 1, 0
    %v145 = vcvt.s32.f32 %v144
    %146 = vset.pattern.permute.xlu0 7
    %147 = vperm.xlu0 %146, %v52
    %v148 = vpop.permute.xlu0 %147
    %v150 = vmul.f32 %v148, %v145
    %v151 = vadd.f32 %v139, %v150
    %v152 = vld [vmem:[#allocation2] sm:$0xf]
    %v153 = vld [vmem:[#allocation2 + $0x4] sm:$0xf]
    %v154 = vld [vmem:[#allocation2 + $0x8] sm:$0xf]
    %v155 = vld [vmem:[#allocation2 + $0xc] sm:$0xf]
    %v156 = vld [vmem:[#allocation2 + $0x10] sm:$0xf]
    %v157 = vld [vmem:[#allocation2 + $0x14] sm:$0xf]
    %v158 = vld [vmem:[#allocation2 + $0x18] sm:$0xf]
    %v159 = vld [vmem:[#allocation2 + $0x1c] sm:$0xf]
    %v160 = vld [vmem:[#allocation2 + $0x20] sm:$0xf]
    %v161 = vld [vmem:[#allocation2 + $0x24] sm:$0xf]
    %v162 = vld [vmem:[#allocation2 + $0x28] sm:$0xf]
    %v163 = vld [vmem:[#allocation2 + $0x2c] sm:$0xf]
    %v164 = vld [vmem:[#allocation2 + $0x30] sm:$0xf]
    %v165 = vld [vmem:[#allocation2 + $0x34] sm:$0xf]
    %v166 = vld [vmem:[#allocation2 + $0x38] sm:$0xf]
    %v167 = vld [vmem:[#allocation2 + $0x3c] sm:$0xf]
    %v168 = vld [vmem:[#allocation2 + $0x40] sm:$0xf]
    %v169 = vpack.c.bf16 %v151, %v151
    %v170 = vpack.c.bf16 %v52, %v52
    %vm171 = vcmask 64512
    %v173 = vsel %vm171, %v170, 0
    %vm175 = vcmask 1043456
    %v177 = vsel %vm175, %v168, 0
    %179 = vmatpush.bf16.msra.mxu0 0
    %180 = vmatpush.bf16.msra.mxu0 0
    %181 = vmatpush.bf16.msra.mxu0 0
    %182 = vmatpush.bf16.msra.mxu0 0
    %183 = vmatpush.bf16.msra.mxu0 0
    %184 = vmatpush.bf16.msra.mxu0 0
    %185 = vmatpush.bf16.msra.mxu0 0
    %186 = vmatpush.bf16.msra.mxu0 %v177
    %187 = vmatmul.bf16.gmra.mxu0 %v173
    %v188 = vpop.f32.mrf.mxu0
    %v189 = vadd.f32 0.0, %v188
    %v190 = vpop.f32.mrf.mxu0
    %191 = vdwg.mxu0
    %v208 = vunpack.c.l.b16 %v152
    %v209 = vunpack.c.l.b16 %v153
    %v210 = vunpack.c.l.b16 %v154
    %v211 = vunpack.c.l.b16 %v155
    %v212 = vunpack.c.l.b16 %v156
    %v213 = vunpack.c.l.b16 %v157
    %v214 = vunpack.c.l.b16 %v158
    %v215 = vunpack.c.l.b16 %v159
    %v216 = vunpack.c.l.b16 %v160
    %v217 = vunpack.c.l.b16 %v161
    %v218 = vunpack.c.l.b16 %v162
    %v219 = vunpack.c.l.b16 %v163
    %v220 = vunpack.c.l.b16 %v164
    %v221 = vunpack.c.l.b16 %v165
    %v222 = vunpack.c.l.b16 %v166
    %v223 = vunpack.c.l.b16 %v167
    %v224 = vpack.c.b16 %v209, %v208
    %v225 = vpack.c.b16 %v211, %v210
    %v226 = vpack.c.b16 %v213, %v212
    %v227 = vpack.c.b16 %v215, %v214
    %v228 = vpack.c.b16 %v217, %v216
    %v229 = vpack.c.b16 %v219, %v218
    %v230 = vpack.c.b16 %v221, %v220
    %v231 = vpack.c.b16 %v223, %v222
    %240 = vmatpush.bf16.msra.mxu0 %v231
    %241 = vmatpush.bf16.msra.mxu0 %v230
    %242 = vmatpush.bf16.msra.mxu0 %v229
    %243 = vmatpush.bf16.msra.mxu0 %v228
    %244 = vmatpush.bf16.msra.mxu0 %v227
    %245 = vmatpush.bf16.msra.mxu0 %v226
    %246 = vmatpush.bf16.msra.mxu0 %v225
    %247 = vmatpush.bf16.msra.mxu0 %v224
    %248 = vmatmul.bf16.gmra.mxu0 %v169
    %v249 = vpop.f32.mrf.mxu0
    %v250 = vadd.f32 %v189, %v249
    %v251 = vpop.f32.mrf.mxu0
    %252 = vdwg.mxu0
    %vm253 = vcmask 60416
    %v254 = vsel %vm253, %v52, 0.0
    %255 = vadd.xlane.f32.xlu0 %v254
    %v256 = vpop.xlane.xlu0 %255
    %v257 = vmax.f32 %v256, 1.0
    %v258 = vrcp.pop %v257
    %v259 = vmul.f32 %v257, %v258
    %v260 = vsub.f32 1.0, %v259
    %v261 = vmul.f32 %v258, %v260
    %v262 = vadd.f32 %v258, %v261
    %vm263 = vweird.f32 %v257
    %vm264 = vweird.f32 %v258
    %vm265 = vmor %vm263, %vm264
    %v266 = vsel %vm265, %v258, %v262
    %v267 = vand.u32 2147483647, %v257
    %vm268 = vcmp.eq.f32.partialorder %v267, 8.507059e+37
    %v269 = vand.u32 %v257, 2147483648
    %v270 = vor.u32 1.1754944e-38, %v269
    %v271 = vsel %vm268, %v270, %v266
    %v272 = vmul.f32 %v250, %v271
    %v273 = vld [vmem:[#allocation2 + $0x48] sm:$0xf]
    %v274 = vld [vmem:[#allocation2 + $0x4c] sm:$0xf]
    %v275 = vld [vmem:[#allocation2 + $0x50] sm:$0xf]
    %v276 = vld [vmem:[#allocation2 + $0x54] sm:$0xf]
    %v277 = vld [vmem:[#allocation2 + $0x58] sm:$0xf]
    %v278 = vld [vmem:[#allocation2 + $0x5c] sm:$0xf]
    %v279 = vld [vmem:[#allocation2 + $0x60] sm:$0xf]
    %v280 = vld [vmem:[#allocation2 + $0x64] sm:$0xf]
    %v281 = vld [vmem:[#allocation2 + $0x68] sm:$0xf]
    %v282 = vld [vmem:[#allocation2 + $0x6c] sm:$0xf]
    %v283 = vld [vmem:[#allocation2 + $0x70] sm:$0xf]
    %v284 = vld [vmem:[#allocation2 + $0x74] sm:$0xf]
    %v285 = vld [vmem:[#allocation2 + $0x78] sm:$0xf]
    %v286 = vld [vmem:[#allocation2 + $0x7c] sm:$0xf]
    %v287 = vld [vmem:[#allocation2 + $0x80] sm:$0xf]
    %v288 = vld [vmem:[#allocation2 + $0x84] sm:$0xf]
    %v289 = vld [vmem:[#allocation5] sm:$0x1]
    %v290 = vpack.c.bf16 %v272, %v272
    %v291 = vperm.slane %v289, 0
    %v308 = vunpack.c.l.b16 %v273
    %v309 = vunpack.c.l.b16 %v274
    %v310 = vunpack.c.l.b16 %v275
    %v311 = vunpack.c.l.b16 %v276
    %v312 = vunpack.c.l.b16 %v277
    %v313 = vunpack.c.l.b16 %v278
    %v314 = vunpack.c.l.b16 %v279
    %v315 = vunpack.c.l.b16 %v280
    %v316 = vunpack.c.l.b16 %v281
    %v317 = vunpack.c.l.b16 %v282
    %v318 = vunpack.c.l.b16 %v283
    %v319 = vunpack.c.l.b16 %v284
    %v320 = vunpack.c.l.b16 %v285
    %v321 = vunpack.c.l.b16 %v286
    %v322 = vunpack.c.l.b16 %v287
    %v323 = vunpack.c.l.b16 %v288
    %v324 = vpack.c.b16 %v309, %v308
    %v325 = vpack.c.b16 %v311, %v310
    %v326 = vpack.c.b16 %v313, %v312
    %v327 = vpack.c.b16 %v315, %v314
    %v328 = vpack.c.b16 %v317, %v316
    %v329 = vpack.c.b16 %v319, %v318
    %v330 = vpack.c.b16 %v321, %v320
    %v331 = vpack.c.b16 %v323, %v322
    %340 = vmatpush.bf16.msra.mxu0 %v331
    %341 = vmatpush.bf16.msra.mxu0 %v330
    %342 = vmatpush.bf16.msra.mxu0 %v329
    %343 = vmatpush.bf16.msra.mxu0 %v328
    %344 = vmatpush.bf16.msra.mxu0 %v327
    %345 = vmatpush.bf16.msra.mxu0 %v326
    %346 = vmatpush.bf16.msra.mxu0 %v325
    %347 = vmatpush.bf16.msra.mxu0 %v324
    %348 = vmatmul.bf16.gmra.mxu0 %v290
    %v349 = vpop.f32.mrf.mxu0
    %v350 = vadd.f32 %v291, %v349
    %v351 = vpop.f32.mrf.mxu0
    %352 = vdwg.mxu0
    %v353 = vtanh.pop %v350
    %v354 = vlaneseq
    %v355 = vshrl.u32 %v354, 7
    %vm356 = vcmp.lt.s32.totalorder %v355, 2
    %v357 = vsel %vm356, 1, 0
    %v358 = vcvt.s32.f32 %v357
    %v359 = vsub.f32 1.0, %v358
    %v360 = vld [vmem:[#allocation5 + $0x8] sm:$0xf]
    %v361 = vmul.f32 %v353, %v358
    %v362 = vmul.f32 %v353, %v359
    %v363 = vpack.c.bf16 %v361, %v361
    %v364 = vpack.c.bf16 %v362, %v362
    %v365 = vld [vmem:[#allocation2 + $0x88] sm:$0xf]
    %v366 = vld [vmem:[#allocation2 + $0x8c] sm:$0xf]
    %v367 = vld [vmem:[#allocation2 + $0x90] sm:$0xf]
    %v368 = vld [vmem:[#allocation2 + $0x94] sm:$0xf]
    %v369 = vld [vmem:[#allocation2 + $0x98] sm:$0xf]
    %v370 = vld [vmem:[#allocation2 + $0x9c] sm:$0xf]
    %v371 = vld [vmem:[#allocation2 + $0xa0] sm:$0xf]
    %v372 = vld [vmem:[#allocation2 + $0xa4] sm:$0xf]
    %v373 = vld [vmem:[#allocation2 + $0xa8] sm:$0xf]
    %v374 = vld [vmem:[#allocation2 + $0xac] sm:$0xf]
    %v375 = vld [vmem:[#allocation2 + $0xb0] sm:$0xf]
    %v376 = vld [vmem:[#allocation2 + $0xb4] sm:$0xf]
    %v377 = vld [vmem:[#allocation2 + $0xb8] sm:$0xf]
    %v378 = vld [vmem:[#allocation2 + $0xbc] sm:$0xf]
    %v379 = vld [vmem:[#allocation2 + $0xc0] sm:$0xf]
    %v380 = vld [vmem:[#allocation2 + $0xc4] sm:$0xf]
    %v381 = vld [vmem:[#allocation2 + $0xc8] sm:$0xf]
    %v382 = vld [vmem:[#allocation2 + $0xcc] sm:$0xf]
    %v383 = vld [vmem:[#allocation2 + $0xd0] sm:$0xf]
    %v384 = vld [vmem:[#allocation2 + $0xd4] sm:$0xf]
    %v385 = vld [vmem:[#allocation2 + $0xd8] sm:$0xf]
    %v386 = vld [vmem:[#allocation2 + $0xdc] sm:$0xf]
    %v387 = vld [vmem:[#allocation2 + $0xe0] sm:$0xf]
    %v388 = vld [vmem:[#allocation2 + $0xe4] sm:$0xf]
    %v389 = vld [vmem:[#allocation2 + $0xe8] sm:$0xf]
    %v390 = vld [vmem:[#allocation2 + $0xec] sm:$0xf]
    %v391 = vld [vmem:[#allocation2 + $0xf0] sm:$0xf]
    %v392 = vld [vmem:[#allocation2 + $0xf4] sm:$0xf]
    %v393 = vld [vmem:[#allocation2 + $0xf8] sm:$0xf]
    %v394 = vld [vmem:[#allocation2 + $0xfc] sm:$0xf]
    %v395 = vld [vmem:[#allocation2 + $0x100] sm:$0xf]
    %v396 = vld [vmem:[#allocation2 + $0x104] sm:$0xf]
    %v429 = vunpack.c.l.b16 %v365
    %v430 = vunpack.c.l.b16 %v366
    %v431 = vunpack.c.l.b16 %v367
    %v432 = vunpack.c.l.b16 %v368
    %v433 = vunpack.c.l.b16 %v369
    %v434 = vunpack.c.l.b16 %v370
    %v435 = vunpack.c.l.b16 %v371
    %v436 = vunpack.c.l.b16 %v372
    %v437 = vunpack.c.l.b16 %v373
    %v438 = vunpack.c.l.b16 %v374
    %v439 = vunpack.c.l.b16 %v375
    %v440 = vunpack.c.l.b16 %v376
    %v441 = vunpack.c.l.b16 %v377
    %v442 = vunpack.c.l.b16 %v378
    %v443 = vunpack.c.l.b16 %v379
    %v444 = vunpack.c.l.b16 %v380
    %v445 = vunpack.c.l.b16 %v381
    %v446 = vunpack.c.l.b16 %v382
    %v447 = vunpack.c.l.b16 %v383
    %v448 = vunpack.c.l.b16 %v384
    %v449 = vunpack.c.l.b16 %v385
    %v450 = vunpack.c.l.b16 %v386
    %v451 = vunpack.c.l.b16 %v387
    %v452 = vunpack.c.l.b16 %v388
    %v453 = vunpack.c.l.b16 %v389
    %v454 = vunpack.c.l.b16 %v390
    %v455 = vunpack.c.l.b16 %v391
    %v456 = vunpack.c.l.b16 %v392
    %v457 = vunpack.c.l.b16 %v393
    %v458 = vunpack.c.l.b16 %v394
    %v459 = vunpack.c.l.b16 %v395
    %v460 = vunpack.c.l.b16 %v396
    %v461 = vpack.c.b16 %v430, %v429
    %v462 = vpack.c.b16 %v432, %v431
    %v463 = vpack.c.b16 %v434, %v433
    %v464 = vpack.c.b16 %v436, %v435
    %v465 = vpack.c.b16 %v438, %v437
    %v466 = vpack.c.b16 %v440, %v439
    %v467 = vpack.c.b16 %v442, %v441
    %v468 = vpack.c.b16 %v444, %v443
    %v469 = vpack.c.b16 %v446, %v445
    %v470 = vpack.c.b16 %v448, %v447
    %v471 = vpack.c.b16 %v450, %v449
    %v472 = vpack.c.b16 %v452, %v451
    %v473 = vpack.c.b16 %v454, %v453
    %v474 = vpack.c.b16 %v456, %v455
    %v475 = vpack.c.b16 %v458, %v457
    %v476 = vpack.c.b16 %v460, %v459
    %493 = vmatpush.bf16.msra.mxu0 %v468
    %494 = vmatpush.bf16.msra.mxu0 %v467
    %495 = vmatpush.bf16.msra.mxu0 %v466
    %496 = vmatpush.bf16.msra.mxu0 %v465
    %497 = vmatpush.bf16.msra.mxu0 %v464
    %498 = vmatpush.bf16.msra.mxu0 %v463
    %499 = vmatpush.bf16.msra.mxu0 %v462
    %500 = vmatpush.bf16.msra.mxu0 %v461
    %501 = vmatmul.bf16.gmra.mxu0 %v363
    %v502 = vpop.f32.mrf.mxu0
    %v503 = vadd.f32 %v360, %v502
    %v504 = vpop.f32.mrf.mxu0
    %505 = vdwg.mxu0
    %506 = vmatpush.bf16.msra.mxu0 %v476
    %507 = vmatpush.bf16.msra.mxu0 %v475
    %508 = vmatpush.bf16.msra.mxu0 %v474
    %509 = vmatpush.bf16.msra.mxu0 %v473
    %510 = vmatpush.bf16.msra.mxu0 %v472
    %511 = vmatpush.bf16.msra.mxu0 %v471
    %512 = vmatpush.bf16.msra.mxu0 %v470
    %513 = vmatpush.bf16.msra.mxu0 %v469
    %514 = vmatmul.bf16.gmra.mxu0 %v364
    %v515 = vpop.f32.mrf.mxu0
    %v516 = vadd.f32 %v503, %v515
    %v517 = vpop.f32.mrf.mxu0
    %518 = vdwg.mxu0
    %v519 = vld [vmem:[#allocation5 + $0x10] sm:$0xf]
    %v520 = vmul.f32 %v516, %v358
    %v521 = vmul.f32 %v516, %v359
    %v522 = vpack.c.bf16 %v520, %v520
    %v523 = vpack.c.bf16 %v521, %v521
    %v524 = vld [vmem:[#allocation2 + $0x108] sm:$0xf]
    %v525 = vld [vmem:[#allocation2 + $0x10c] sm:$0xf]
    %v526 = vld [vmem:[#allocation2 + $0x110] sm:$0xf]
    %v527 = vld [vmem:[#allocation2 + $0x114] sm:$0xf]
    %v528 = vld [vmem:[#allocation2 + $0x118] sm:$0xf]
    %v529 = vld [vmem:[#allocation2 + $0x11c] sm:$0xf]
    %v530 = vld [vmem:[#allocation2 + $0x120] sm:$0xf]
    %v531 = vld [vmem:[#allocation2 + $0x124] sm:$0xf]
    %v532 = vld [vmem:[#allocation2 + $0x128] sm:$0xf]
    %v533 = vld [vmem:[#allocation2 + $0x12c] sm:$0xf]
    %v534 = vld [vmem:[#allocation2 + $0x130] sm:$0xf]
    %v535 = vld [vmem:[#allocation2 + $0x134] sm:$0xf]
    %v536 = vld [vmem:[#allocation2 + $0x138] sm:$0xf]
    %v537 = vld [vmem:[#allocation2 + $0x13c] sm:$0xf]
    %v538 = vld [vmem:[#allocation2 + $0x140] sm:$0xf]
    %v539 = vld [vmem:[#allocation2 + $0x144] sm:$0xf]
    %v540 = vld [vmem:[#allocation2 + $0x148] sm:$0xf]
    %v541 = vld [vmem:[#allocation2 + $0x14c] sm:$0xf]
    %v542 = vld [vmem:[#allocation2 + $0x150] sm:$0xf]
    %v543 = vld [vmem:[#allocation2 + $0x154] sm:$0xf]
    %v544 = vld [vmem:[#allocation2 + $0x158] sm:$0xf]
    %v545 = vld [vmem:[#allocation2 + $0x15c] sm:$0xf]
    %v546 = vld [vmem:[#allocation2 + $0x160] sm:$0xf]
    %v547 = vld [vmem:[#allocation2 + $0x164] sm:$0xf]
    %v548 = vld [vmem:[#allocation2 + $0x168] sm:$0xf]
    %v549 = vld [vmem:[#allocation2 + $0x16c] sm:$0xf]
    %v550 = vld [vmem:[#allocation2 + $0x170] sm:$0xf]
    %v551 = vld [vmem:[#allocation2 + $0x174] sm:$0xf]
    %v552 = vld [vmem:[#allocation2 + $0x178] sm:$0xf]
    %v553 = vld [vmem:[#allocation2 + $0x17c] sm:$0xf]
    %v554 = vld [vmem:[#allocation2 + $0x180] sm:$0xf]
    %v555 = vld [vmem:[#allocation2 + $0x184] sm:$0xf]
    %v588 = vunpack.c.l.b16 %v524
    %v589 = vunpack.c.l.b16 %v525
    %v590 = vunpack.c.l.b16 %v526
    %v591 = vunpack.c.l.b16 %v527
    %v592 = vunpack.c.l.b16 %v528
    %v593 = vunpack.c.l.b16 %v529
    %v594 = vunpack.c.l.b16 %v530
    %v595 = vunpack.c.l.b16 %v531
    %v596 = vunpack.c.l.b16 %v532
    %v597 = vunpack.c.l.b16 %v533
    %v598 = vunpack.c.l.b16 %v534
    %v599 = vunpack.c.l.b16 %v535
    %v600 = vunpack.c.l.b16 %v536
    %v601 = vunpack.c.l.b16 %v537
    %v602 = vunpack.c.l.b16 %v538
    %v603 = vunpack.c.l.b16 %v539
    %v604 = vunpack.c.l.b16 %v540
    %v605 = vunpack.c.l.b16 %v541
    %v606 = vunpack.c.l.b16 %v542
    %v607 = vunpack.c.l.b16 %v543
    %v608 = vunpack.c.l.b16 %v544
    %v609 = vunpack.c.l.b16 %v545
    %v610 = vunpack.c.l.b16 %v546
    %v611 = vunpack.c.l.b16 %v547
    %v612 = vunpack.c.l.b16 %v548
    %v613 = vunpack.c.l.b16 %v549
    %v614 = vunpack.c.l.b16 %v550
    %v615 = vunpack.c.l.b16 %v551
    %v616 = vunpack.c.l.b16 %v552
    %v617 = vunpack.c.l.b16 %v553
    %v618 = vunpack.c.l.b16 %v554
    %v619 = vunpack.c.l.b16 %v555
    %v620 = vpack.c.b16 %v589, %v588
    %v621 = vpack.c.b16 %v591, %v590
    %v622 = vpack.c.b16 %v593, %v592
    %v623 = vpack.c.b16 %v595, %v594
    %v624 = vpack.c.b16 %v597, %v596
    %v625 = vpack.c.b16 %v599, %v598
    %v626 = vpack.c.b16 %v601, %v600
    %v627 = vpack.c.b16 %v603, %v602
    %v628 = vpack.c.b16 %v605, %v604
    %v629 = vpack.c.b16 %v607, %v606
    %v630 = vpack.c.b16 %v609, %v608
    %v631 = vpack.c.b16 %v611, %v610
    %v632 = vpack.c.b16 %v613, %v612
    %v633 = vpack.c.b16 %v615, %v614
    %v634 = vpack.c.b16 %v617, %v616
    %v635 = vpack.c.b16 %v619, %v618
    %652 = vmatpush.bf16.msra.mxu0 %v627
    %653 = vmatpush.bf16.msra.mxu0 %v626
    %654 = vmatpush.bf16.msra.mxu0 %v625
    %655 = vmatpush.bf16.msra.mxu0 %v624
    %656 = vmatpush.bf16.msra.mxu0 %v623
    %657 = vmatpush.bf16.msra.mxu0 %v622
    %658 = vmatpush.bf16.msra.mxu0 %v621
    %659 = vmatpush.bf16.msra.mxu0 %v620
    %660 = vmatmul.bf16.gmra.mxu0 %v522
    %v661 = vpop.f32.mrf.mxu0
    %v662 = vadd.f32 %v519, %v661
    %v663 = vpop.f32.mrf.mxu0
    %664 = vdwg.mxu0
    %665 = vmatpush.bf16.msra.mxu0 %v635
    %666 = vmatpush.bf16.msra.mxu0 %v634
    %667 = vmatpush.bf16.msra.mxu0 %v633
    %668 = vmatpush.bf16.msra.mxu0 %v632
    %669 = vmatpush.bf16.msra.mxu0 %v631
    %670 = vmatpush.bf16.msra.mxu0 %v630
    %671 = vmatpush.bf16.msra.mxu0 %v629
    %672 = vmatpush.bf16.msra.mxu0 %v628
    %673 = vmatmul.bf16.gmra.mxu0 %v523
    %v674 = vpop.f32.mrf.mxu0
    %v675 = vadd.f32 %v662, %v674
    %v676 = vpop.f32.mrf.mxu0
    %677 = vdwg.mxu0
    %v678 = vmul.f32 %v675, %v358
    %v679 = vmul.f32 %v675, %v359
    %v680 = vpack.c.bf16 %v678, %v678
    %v681 = vpack.c.bf16 %v679, %v679
    %v682 = vld [vmem:[#allocation2 + $0x188] sm:$0xf]
    %v683 = vld [vmem:[#allocation2 + $0x18c] sm:$0xf]
    %v684 = vld [vmem:[#allocation2 + $0x190] sm:$0xf]
    %v685 = vld [vmem:[#allocation2 + $0x194] sm:$0xf]
    %v686 = vld [vmem:[#allocation2 + $0x198] sm:$0xf]
    %v687 = vld [vmem:[#allocation2 + $0x19c] sm:$0xf]
    %v688 = vld [vmem:[#allocation2 + $0x1a0] sm:$0xf]
    %v689 = vld [vmem:[#allocation2 + $0x1a4] sm:$0xf]
    %v690 = vld [vmem:[#allocation2 + $0x1a8] sm:$0xf]
    %v691 = vld [vmem:[#allocation2 + $0x1ac] sm:$0xf]
    %v692 = vld [vmem:[#allocation2 + $0x1b0] sm:$0xf]
    %v693 = vld [vmem:[#allocation2 + $0x1b4] sm:$0xf]
    %v694 = vld [vmem:[#allocation2 + $0x1b8] sm:$0xf]
    %v695 = vld [vmem:[#allocation2 + $0x1bc] sm:$0xf]
    %v696 = vld [vmem:[#allocation2 + $0x1c0] sm:$0xf]
    %v697 = vld [vmem:[#allocation2 + $0x1c4] sm:$0xf]
    %v698 = vld [vmem:[#allocation2 + $0x1c8] sm:$0xf]
    %v699 = vld [vmem:[#allocation2 + $0x1cc] sm:$0xf]
    %v700 = vld [vmem:[#allocation2 + $0x1d0] sm:$0xf]
    %v701 = vld [vmem:[#allocation2 + $0x1d4] sm:$0xf]
    %v702 = vld [vmem:[#allocation2 + $0x1d8] sm:$0xf]
    %v703 = vld [vmem:[#allocation2 + $0x1dc] sm:$0xf]
    %v704 = vld [vmem:[#allocation2 + $0x1e0] sm:$0xf]
    %v705 = vld [vmem:[#allocation2 + $0x1e4] sm:$0xf]
    %v706 = vld [vmem:[#allocation2 + $0x1e8] sm:$0xf]
    %v707 = vld [vmem:[#allocation2 + $0x1ec] sm:$0xf]
    %v708 = vld [vmem:[#allocation2 + $0x1f0] sm:$0xf]
    %v709 = vld [vmem:[#allocation2 + $0x1f4] sm:$0xf]
    %v710 = vld [vmem:[#allocation2 + $0x1f8] sm:$0xf]
    %v711 = vld [vmem:[#allocation2 + $0x1fc] sm:$0xf]
    %v712 = vld [vmem:[#allocation2 + $0x200] sm:$0xf]
    %v713 = vld [vmem:[#allocation2 + $0x204] sm:$0xf]
    %v714 = vld [vmem:[#allocation5 + $0x18] sm:$0xf]
    %v747 = vunpack.c.l.b16 %v682
    %v748 = vunpack.c.l.b16 %v683
    %v749 = vunpack.c.l.b16 %v684
    %v750 = vunpack.c.l.b16 %v685
    %v751 = vunpack.c.l.b16 %v686
    %v752 = vunpack.c.l.b16 %v687
    %v753 = vunpack.c.l.b16 %v688
    %v754 = vunpack.c.l.b16 %v689
    %v755 = vunpack.c.l.b16 %v690
    %v756 = vunpack.c.l.b16 %v691
    %v757 = vunpack.c.l.b16 %v692
    %v758 = vunpack.c.l.b16 %v693
    %v759 = vunpack.c.l.b16 %v694
    %v760 = vunpack.c.l.b16 %v695
    %v761 = vunpack.c.l.b16 %v696
    %v762 = vunpack.c.l.b16 %v697
    %v763 = vunpack.c.l.b16 %v698
    %v764 = vunpack.c.l.b16 %v699
    %v765 = vunpack.c.l.b16 %v700
    %v766 = vunpack.c.l.b16 %v701
    %v767 = vunpack.c.l.b16 %v702
    %v768 = vunpack.c.l.b16 %v703
    %v769 = vunpack.c.l.b16 %v704
    %v770 = vunpack.c.l.b16 %v705
    %v771 = vunpack.c.l.b16 %v706
    %v772 = vunpack.c.l.b16 %v707
    %v773 = vunpack.c.l.b16 %v708
    %v774 = vunpack.c.l.b16 %v709
    %v775 = vunpack.c.l.b16 %v710
    %v776 = vunpack.c.l.b16 %v711
    %v777 = vunpack.c.l.b16 %v712
    %v778 = vunpack.c.l.b16 %v713
    %v779 = vpack.c.b16 %v748, %v747
    %v780 = vpack.c.b16 %v750, %v749
    %v781 = vpack.c.b16 %v752, %v751
    %v782 = vpack.c.b16 %v754, %v753
    %v783 = vpack.c.b16 %v756, %v755
    %v784 = vpack.c.b16 %v758, %v757
    %v785 = vpack.c.b16 %v760, %v759
    %v786 = vpack.c.b16 %v762, %v761
    %v787 = vpack.c.b16 %v764, %v763
    %v788 = vpack.c.b16 %v766, %v765
    %v789 = vpack.c.b16 %v768, %v767
    %v790 = vpack.c.b16 %v770, %v769
    %v791 = vpack.c.b16 %v772, %v771
    %v792 = vpack.c.b16 %v774, %v773
    %v793 = vpack.c.b16 %v776, %v775
    %v794 = vpack.c.b16 %v778, %v777
    %811 = vmatpush.bf16.msra.mxu0 %v786
    %812 = vmatpush.bf16.msra.mxu0 %v785
    %813 = vmatpush.bf16.msra.mxu0 %v784
    %814 = vmatpush.bf16.msra.mxu0 %v783
    %815 = vmatpush.bf16.msra.mxu0 %v782
    %816 = vmatpush.bf16.msra.mxu0 %v781
    %817 = vmatpush.bf16.msra.mxu0 %v780
    %818 = vmatpush.bf16.msra.mxu0 %v779
    %819 = vmatmul.bf16.gmra.mxu0 %v680
    %v820 = vpop.f32.mrf.mxu0
    %v821 = vadd.f32 %v714, %v820
    %v822 = vpop.f32.mrf.mxu0
    %823 = vdwg.mxu0
    %824 = vmatpush.bf16.msra.mxu0 %v794
    %825 = vmatpush.bf16.msra.mxu0 %v793
    %826 = vmatpush.bf16.msra.mxu0 %v792
    %827 = vmatpush.bf16.msra.mxu0 %v791
    %828 = vmatpush.bf16.msra.mxu0 %v790
    %829 = vmatpush.bf16.msra.mxu0 %v789
    %830 = vmatpush.bf16.msra.mxu0 %v788
    %831 = vmatpush.bf16.msra.mxu0 %v787
    %832 = vmatmul.bf16.gmra.mxu0 %v681
    %v833 = vpop.f32.mrf.mxu0
    %v834 = vadd.f32 %v821, %v833
    %v835 = vpop.f32.mrf.mxu0
    %836 = vdwg.mxu0
    %v838 = vrot.slane %v834, 2
    %v840 = vmul.f32 %v834, %v838
    %v841 = vadd.f32 %v840, 0.0
    %v842 = vld [vmem:[#allocation2 + $0x208] sm:$0xf]
    %v843 = vld [vmem:[#allocation2 + $0x20c] sm:$0xf]
    %v844 = vld [vmem:[#allocation2 + $0x210] sm:$0xf]
    %v845 = vld [vmem:[#allocation2 + $0x214] sm:$0xf]
    %v846 = vld [vmem:[#allocation2 + $0x218] sm:$0xf]
    %v847 = vld [vmem:[#allocation2 + $0x21c] sm:$0xf]
    %v848 = vld [vmem:[#allocation2 + $0x220] sm:$0xf]
    %v849 = vld [vmem:[#allocation2 + $0x224] sm:$0xf]
    %v850 = vld [vmem:[#allocation2 + $0x228] sm:$0xf]
    %v851 = vld [vmem:[#allocation2 + $0x22c] sm:$0xf]
    %v852 = vld [vmem:[#allocation2 + $0x230] sm:$0xf]
    %v853 = vld [vmem:[#allocation2 + $0x234] sm:$0xf]
    %v854 = vld [vmem:[#allocation2 + $0x238] sm:$0xf]
    %v855 = vld [vmem:[#allocation2 + $0x23c] sm:$0xf]
    %v856 = vld [vmem:[#allocation2 + $0x240] sm:$0xf]
    %v857 = vld [vmem:[#allocation2 + $0x244] sm:$0xf]
    %v858 = vld [vmem:[#allocation2 + $0x248] sm:$0xf]
    %v859 = vld [vmem:[#allocation2 + $0x24c] sm:$0xf]
    %v860 = vld [vmem:[#allocation2 + $0x250] sm:$0xf]
    %v861 = vld [vmem:[#allocation2 + $0x254] sm:$0xf]
    %v862 = vld [vmem:[#allocation2 + $0x258] sm:$0xf]
    %v863 = vld [vmem:[#allocation2 + $0x25c] sm:$0xf]
    %v864 = vld [vmem:[#allocation2 + $0x260] sm:$0xf]
    %v865 = vld [vmem:[#allocation2 + $0x264] sm:$0xf]
    %v866 = vld [vmem:[#allocation2 + $0x268] sm:$0xf]
    %v867 = vld [vmem:[#allocation2 + $0x26c] sm:$0xf]
    %v868 = vld [vmem:[#allocation2 + $0x270] sm:$0xf]
    %v869 = vld [vmem:[#allocation2 + $0x274] sm:$0xf]
    %v870 = vld [vmem:[#allocation2 + $0x278] sm:$0xf]
    %v871 = vld [vmem:[#allocation2 + $0x27c] sm:$0xf]
    %v872 = vld [vmem:[#allocation2 + $0x280] sm:$0xf]
    %v873 = vld [vmem:[#allocation2 + $0x284] sm:$0xf]
    %v874 = vld [vmem:[#allocation5 + $0x20] sm:$0xf]
    %v907 = vunpack.c.l.b16 %v842
    %v908 = vunpack.c.l.b16 %v843
    %v909 = vunpack.c.l.b16 %v844
    %v910 = vunpack.c.l.b16 %v845
    %v911 = vunpack.c.l.b16 %v846
    %v912 = vunpack.c.l.b16 %v847
    %v913 = vunpack.c.l.b16 %v848
    %v914 = vunpack.c.l.b16 %v849
    %v915 = vunpack.c.l.b16 %v850
    %v916 = vunpack.c.l.b16 %v851
    %v917 = vunpack.c.l.b16 %v852
    %v918 = vunpack.c.l.b16 %v853
    %v919 = vunpack.c.l.b16 %v854
    %v920 = vunpack.c.l.b16 %v855
    %v921 = vunpack.c.l.b16 %v856
    %v922 = vunpack.c.l.b16 %v857
    %v923 = vunpack.c.l.b16 %v858
    %v924 = vunpack.c.l.b16 %v859
    %v925 = vunpack.c.l.b16 %v860
    %v926 = vunpack.c.l.b16 %v861
    %v927 = vunpack.c.l.b16 %v862
    %v928 = vunpack.c.l.b16 %v863
    %v929 = vunpack.c.l.b16 %v864
    %v930 = vunpack.c.l.b16 %v865
    %v931 = vunpack.c.l.b16 %v866
    %v932 = vunpack.c.l.b16 %v867
    %v933 = vunpack.c.l.b16 %v868
    %v934 = vunpack.c.l.b16 %v869
    %v935 = vunpack.c.l.b16 %v870
    %v936 = vunpack.c.l.b16 %v871
    %v937 = vunpack.c.l.b16 %v872
    %v938 = vunpack.c.l.b16 %v873
    %v939 = vpack.c.b16 %v908, %v907
    %v940 = vpack.c.b16 %v910, %v909
    %v941 = vpack.c.b16 %v912, %v911
    %v942 = vpack.c.b16 %v914, %v913
    %v943 = vpack.c.b16 %v916, %v915
    %v944 = vpack.c.b16 %v918, %v917
    %v945 = vpack.c.b16 %v920, %v919
    %v946 = vpack.c.b16 %v922, %v921
    %v947 = vpack.c.b16 %v924, %v923
    %v948 = vpack.c.b16 %v926, %v925
    %v949 = vpack.c.b16 %v928, %v927
    %v950 = vpack.c.b16 %v930, %v929
    %v951 = vpack.c.b16 %v932, %v931
    %v952 = vpack.c.b16 %v934, %v933
    %v953 = vpack.c.b16 %v936, %v935
    %v954 = vpack.c.b16 %v938, %v937
    %971 = vmatpush.bf16.msra.mxu0 %v946
    %972 = vmatpush.bf16.msra.mxu0 %v945
    %973 = vmatpush.bf16.msra.mxu0 %v944
    %974 = vmatpush.bf16.msra.mxu0 %v943
    %975 = vmatpush.bf16.msra.mxu0 %v942
    %976 = vmatpush.bf16.msra.mxu0 %v941
    %977 = vmatpush.bf16.msra.mxu0 %v940
    %978 = vmatpush.bf16.msra.mxu0 %v939
    %979 = vmatmul.bf16.gmra.mxu0 %v680
    %v980 = vpop.f32.mrf.mxu0
    %v981 = vadd.f32 %v874, %v980
    %v982 = vpop.f32.mrf.mxu0
    %983 = vdwg.mxu0
    %984 = vmatpush.bf16.msra.mxu0 %v954
    %985 = vmatpush.bf16.msra.mxu0 %v953
    %986 = vmatpush.bf16.msra.mxu0 %v952
    %987 = vmatpush.bf16.msra.mxu0 %v951
    %988 = vmatpush.bf16.msra.mxu0 %v950
    %989 = vmatpush.bf16.msra.mxu0 %v949
    %990 = vmatpush.bf16.msra.mxu0 %v948
    %991 = vmatpush.bf16.msra.mxu0 %v947
    %992 = vmatmul.bf16.gmra.mxu0 %v681
    %v993 = vpop.f32.mrf.mxu0
    %v994 = vadd.f32 %v981, %v993
    %v995 = vpop.f32.mrf.mxu0
    %996 = vdwg.mxu0
    %v998 = vrot.slane %v994, 2
    %v1000 = vmul.f32 %v994, %v998
    %v1001 = vadd.f32 %v841, %v1000
    %v1002 = vld [vmem:[#allocation2 + $0x288] sm:$0xf]
    %v1003 = vld [vmem:[#allocation2 + $0x28c] sm:$0xf]
    %v1004 = vld [vmem:[#allocation2 + $0x290] sm:$0xf]
    %v1005 = vld [vmem:[#allocation2 + $0x294] sm:$0xf]
    %v1006 = vld [vmem:[#allocation2 + $0x298] sm:$0xf]
    %v1007 = vld [vmem:[#allocation2 + $0x29c] sm:$0xf]
    %v1008 = vld [vmem:[#allocation2 + $0x2a0] sm:$0xf]
    %v1009 = vld [vmem:[#allocation2 + $0x2a4] sm:$0xf]
    %v1010 = vld [vmem:[#allocation2 + $0x2a8] sm:$0xf]
    %v1011 = vld [vmem:[#allocation2 + $0x2ac] sm:$0xf]
    %v1012 = vld [vmem:[#allocation2 + $0x2b0] sm:$0xf]
    %v1013 = vld [vmem:[#allocation2 + $0x2b4] sm:$0xf]
    %v1014 = vld [vmem:[#allocation2 + $0x2b8] sm:$0xf]
    %v1015 = vld [vmem:[#allocation2 + $0x2bc] sm:$0xf]
    %v1016 = vld [vmem:[#allocation2 + $0x2c0] sm:$0xf]
    %v1017 = vld [vmem:[#allocation2 + $0x2c4] sm:$0xf]
    %v1018 = vld [vmem:[#allocation2 + $0x2c8] sm:$0xf]
    %v1019 = vld [vmem:[#allocation2 + $0x2cc] sm:$0xf]
    %v1020 = vld [vmem:[#allocation2 + $0x2d0] sm:$0xf]
    %v1021 = vld [vmem:[#allocation2 + $0x2d4] sm:$0xf]
    %v1022 = vld [vmem:[#allocation2 + $0x2d8] sm:$0xf]
    %v1023 = vld [vmem:[#allocation2 + $0x2dc] sm:$0xf]
    %v1024 = vld [vmem:[#allocation2 + $0x2e0] sm:$0xf]
    %v1025 = vld [vmem:[#allocation2 + $0x2e4] sm:$0xf]
    %v1026 = vld [vmem:[#allocation2 + $0x2e8] sm:$0xf]
    %v1027 = vld [vmem:[#allocation2 + $0x2ec] sm:$0xf]
    %v1028 = vld [vmem:[#allocation2 + $0x2f0] sm:$0xf]
    %v1029 = vld [vmem:[#allocation2 + $0x2f4] sm:$0xf]
    %v1030 = vld [vmem:[#allocation2 + $0x2f8] sm:$0xf]
    %v1031 = vld [vmem:[#allocation2 + $0x2fc] sm:$0xf]
    %v1032 = vld [vmem:[#allocation2 + $0x300] sm:$0xf]
    %v1033 = vld [vmem:[#allocation2 + $0x304] sm:$0xf]
    %v1034 = vld [vmem:[#allocation5 + $0x28] sm:$0xf]
    %v1067 = vunpack.c.l.b16 %v1002
    %v1068 = vunpack.c.l.b16 %v1003
    %v1069 = vunpack.c.l.b16 %v1004
    %v1070 = vunpack.c.l.b16 %v1005
    %v1071 = vunpack.c.l.b16 %v1006
    %v1072 = vunpack.c.l.b16 %v1007
    %v1073 = vunpack.c.l.b16 %v1008
    %v1074 = vunpack.c.l.b16 %v1009
    %v1075 = vunpack.c.l.b16 %v1010
    %v1076 = vunpack.c.l.b16 %v1011
    %v1077 = vunpack.c.l.b16 %v1012
    %v1078 = vunpack.c.l.b16 %v1013
    %v1079 = vunpack.c.l.b16 %v1014
    %v1080 = vunpack.c.l.b16 %v1015
    %v1081 = vunpack.c.l.b16 %v1016
    %v1082 = vunpack.c.l.b16 %v1017
    %v1083 = vunpack.c.l.b16 %v1018
    %v1084 = vunpack.c.l.b16 %v1019
    %v1085 = vunpack.c.l.b16 %v1020
    %v1086 = vunpack.c.l.b16 %v1021
    %v1087 = vunpack.c.l.b16 %v1022
    %v1088 = vunpack.c.l.b16 %v1023
    %v1089 = vunpack.c.l.b16 %v1024
    %v1090 = vunpack.c.l.b16 %v1025
    %v1091 = vunpack.c.l.b16 %v1026
    %v1092 = vunpack.c.l.b16 %v1027
    %v1093 = vunpack.c.l.b16 %v1028
    %v1094 = vunpack.c.l.b16 %v1029
    %v1095 = vunpack.c.l.b16 %v1030
    %v1096 = vunpack.c.l.b16 %v1031
    %v1097 = vunpack.c.l.b16 %v1032
    %v1098 = vunpack.c.l.b16 %v1033
    %v1099 = vpack.c.b16 %v1068, %v1067
    %v1100 = vpack.c.b16 %v1070, %v1069
    %v1101 = vpack.c.b16 %v1072, %v1071
    %v1102 = vpack.c.b16 %v1074, %v1073
    %v1103 = vpack.c.b16 %v1076, %v1075
    %v1104 = vpack.c.b16 %v1078, %v1077
    %v1105 = vpack.c.b16 %v1080, %v1079
    %v1106 = vpack.c.b16 %v1082, %v1081
    %v1107 = vpack.c.b16 %v1084, %v1083
    %v1108 = vpack.c.b16 %v1086, %v1085
    %v1109 = vpack.c.b16 %v1088, %v1087
    %v1110 = vpack.c.b16 %v1090, %v1089
    %v1111 = vpack.c.b16 %v1092, %v1091
    %v1112 = vpack.c.b16 %v1094, %v1093
    %v1113 = vpack.c.b16 %v1096, %v1095
    %v1114 = vpack.c.b16 %v1098, %v1097
    %1131 = vmatpush.bf16.msra.mxu0 %v1106
    %1132 = vmatpush.bf16.msra.mxu0 %v1105
    %1133 = vmatpush.bf16.msra.mxu0 %v1104
    %1134 = vmatpush.bf16.msra.mxu0 %v1103
    %1135 = vmatpush.bf16.msra.mxu0 %v1102
    %1136 = vmatpush.bf16.msra.mxu0 %v1101
    %1137 = vmatpush.bf16.msra.mxu0 %v1100
    %1138 = vmatpush.bf16.msra.mxu0 %v1099
    %1139 = vmatmul.bf16.gmra.mxu0 %v680
    %v1140 = vpop.f32.mrf.mxu0
    %v1141 = vadd.f32 %v1034, %v1140
    %v1142 = vpop.f32.mrf.mxu0
    %1143 = vdwg.mxu0
    %1144 = vmatpush.bf16.msra.mxu0 %v1114
    %1145 = vmatpush.bf16.msra.mxu0 %v1113
    %1146 = vmatpush.bf16.msra.mxu0 %v1112
    %1147 = vmatpush.bf16.msra.mxu0 %v1111
    %1148 = vmatpush.bf16.msra.mxu0 %v1110
    %1149 = vmatpush.bf16.msra.mxu0 %v1109
    %1150 = vmatpush.bf16.msra.mxu0 %v1108
    %1151 = vmatpush.bf16.msra.mxu0 %v1107
    %1152 = vmatmul.bf16.gmra.mxu0 %v681
    %v1153 = vpop.f32.mrf.mxu0
    %v1154 = vadd.f32 %v1141, %v1153
    %v1155 = vpop.f32.mrf.mxu0
    %1156 = vdwg.mxu0
    %v1158 = vrot.slane %v1154, 2
    %v1160 = vmul.f32 %v1154, %v1158
    %v1161 = vadd.f32 %v1001, %v1160
    %v1162 = vld [vmem:[#allocation2 + $0x308] sm:$0xf]
    %v1163 = vld [vmem:[#allocation2 + $0x30c] sm:$0xf]
    %v1164 = vld [vmem:[#allocation2 + $0x310] sm:$0xf]
    %v1165 = vld [vmem:[#allocation2 + $0x314] sm:$0xf]
    %v1166 = vld [vmem:[#allocation2 + $0x318] sm:$0xf]
    %v1167 = vld [vmem:[#allocation2 + $0x31c] sm:$0xf]
    %v1168 = vld [vmem:[#allocation2 + $0x320] sm:$0xf]
    %v1169 = vld [vmem:[#allocation2 + $0x324] sm:$0xf]
    %v1170 = vld [vmem:[#allocation2 + $0x328] sm:$0xf]
    %v1171 = vld [vmem:[#allocation2 + $0x32c] sm:$0xf]
    %v1172 = vld [vmem:[#allocation2 + $0x330] sm:$0xf]
    %v1173 = vld [vmem:[#allocation2 + $0x334] sm:$0xf]
    %v1174 = vld [vmem:[#allocation2 + $0x338] sm:$0xf]
    %v1175 = vld [vmem:[#allocation2 + $0x33c] sm:$0xf]
    %v1176 = vld [vmem:[#allocation2 + $0x340] sm:$0xf]
    %v1177 = vld [vmem:[#allocation2 + $0x344] sm:$0xf]
    %v1178 = vld [vmem:[#allocation2 + $0x348] sm:$0xf]
    %v1179 = vld [vmem:[#allocation2 + $0x34c] sm:$0xf]
    %v1180 = vld [vmem:[#allocation2 + $0x350] sm:$0xf]
    %v1181 = vld [vmem:[#allocation2 + $0x354] sm:$0xf]
    %v1182 = vld [vmem:[#allocation2 + $0x358] sm:$0xf]
    %v1183 = vld [vmem:[#allocation2 + $0x35c] sm:$0xf]
    %v1184 = vld [vmem:[#allocation2 + $0x360] sm:$0xf]
    %v1185 = vld [vmem:[#allocation2 + $0x364] sm:$0xf]
    %v1186 = vld [vmem:[#allocation2 + $0x368] sm:$0xf]
    %v1187 = vld [vmem:[#allocation2 + $0x36c] sm:$0xf]
    %v1188 = vld [vmem:[#allocation2 + $0x370] sm:$0xf]
    %v1189 = vld [vmem:[#allocation2 + $0x374] sm:$0xf]
    %v1190 = vld [vmem:[#allocation2 + $0x378] sm:$0xf]
    %v1191 = vld [vmem:[#allocation2 + $0x37c] sm:$0xf]
    %v1192 = vld [vmem:[#allocation2 + $0x380] sm:$0xf]
    %v1193 = vld [vmem:[#allocation2 + $0x384] sm:$0xf]
    %v1194 = vld [vmem:[#allocation5 + $0x30] sm:$0xf]
    %v1227 = vunpack.c.l.b16 %v1162
    %v1228 = vunpack.c.l.b16 %v1163
    %v1229 = vunpack.c.l.b16 %v1164
    %v1230 = vunpack.c.l.b16 %v1165
    %v1231 = vunpack.c.l.b16 %v1166
    %v1232 = vunpack.c.l.b16 %v1167
    %v1233 = vunpack.c.l.b16 %v1168
    %v1234 = vunpack.c.l.b16 %v1169
    %v1235 = vunpack.c.l.b16 %v1170
    %v1236 = vunpack.c.l.b16 %v1171
    %v1237 = vunpack.c.l.b16 %v1172
    %v1238 = vunpack.c.l.b16 %v1173
    %v1239 = vunpack.c.l.b16 %v1174
    %v1240 = vunpack.c.l.b16 %v1175
    %v1241 = vunpack.c.l.b16 %v1176
    %v1242 = vunpack.c.l.b16 %v1177
    %v1243 = vunpack.c.l.b16 %v1178
    %v1244 = vunpack.c.l.b16 %v1179
    %v1245 = vunpack.c.l.b16 %v1180
    %v1246 = vunpack.c.l.b16 %v1181
    %v1247 = vunpack.c.l.b16 %v1182
    %v1248 = vunpack.c.l.b16 %v1183
    %v1249 = vunpack.c.l.b16 %v1184
    %v1250 = vunpack.c.l.b16 %v1185
    %v1251 = vunpack.c.l.b16 %v1186
    %v1252 = vunpack.c.l.b16 %v1187
    %v1253 = vunpack.c.l.b16 %v1188
    %v1254 = vunpack.c.l.b16 %v1189
    %v1255 = vunpack.c.l.b16 %v1190
    %v1256 = vunpack.c.l.b16 %v1191
    %v1257 = vunpack.c.l.b16 %v1192
    %v1258 = vunpack.c.l.b16 %v1193
    %v1259 = vpack.c.b16 %v1228, %v1227
    %v1260 = vpack.c.b16 %v1230, %v1229
    %v1261 = vpack.c.b16 %v1232, %v1231
    %v1262 = vpack.c.b16 %v1234, %v1233
    %v1263 = vpack.c.b16 %v1236, %v1235
    %v1264 = vpack.c.b16 %v1238, %v1237
    %v1265 = vpack.c.b16 %v1240, %v1239
    %v1266 = vpack.c.b16 %v1242, %v1241
    %v1267 = vpack.c.b16 %v1244, %v1243
    %v1268 = vpack.c.b16 %v1246, %v1245
    %v1269 = vpack.c.b16 %v1248, %v1247
    %v1270 = vpack.c.b16 %v1250, %v1249
    %v1271 = vpack.c.b16 %v1252, %v1251
    %v1272 = vpack.c.b16 %v1254, %v1253
    %v1273 = vpack.c.b16 %v1256, %v1255
    %v1274 = vpack.c.b16 %v1258, %v1257
    %1291 = vmatpush.bf16.msra.mxu0 %v1266
    %1292 = vmatpush.bf16.msra.mxu0 %v1265
    %1293 = vmatpush.bf16.msra.mxu0 %v1264
    %1294 = vmatpush.bf16.msra.mxu0 %v1263
    %1295 = vmatpush.bf16.msra.mxu0 %v1262
    %1296 = vmatpush.bf16.msra.mxu0 %v1261
    %1297 = vmatpush.bf16.msra.mxu0 %v1260
    %1298 = vmatpush.bf16.msra.mxu0 %v1259
    %1299 = vmatmul.bf16.gmra.mxu0 %v680
    %v1300 = vpop.f32.mrf.mxu0
    %v1301 = vadd.f32 %v1194, %v1300
    %v1302 = vpop.f32.mrf.mxu0
    %1303 = vdwg.mxu0
    %1304 = vmatpush.bf16.msra.mxu0 %v1274
    %1305 = vmatpush.bf16.msra.mxu0 %v1273
    %1306 = vmatpush.bf16.msra.mxu0 %v1272
    %1307 = vmatpush.bf16.msra.mxu0 %v1271
    %1308 = vmatpush.bf16.msra.mxu0 %v1270
    %1309 = vmatpush.bf16.msra.mxu0 %v1269
    %1310 = vmatpush.bf16.msra.mxu0 %v1268
    %1311 = vmatpush.bf16.msra.mxu0 %v1267
    %1312 = vmatmul.bf16.gmra.mxu0 %v681
    %v1313 = vpop.f32.mrf.mxu0
    %v1314 = vadd.f32 %v1301, %v1313
    %v1315 = vpop.f32.mrf.mxu0
    %1316 = vdwg.mxu0
    %v1318 = vrot.slane %v1314, 2
    %v1320 = vmul.f32 %v1314, %v1318
    %v1321 = vadd.f32 %v1161, %v1320
    %v1322 = vand.u32 2147483647, %v1321
    %v1323 = vrsqrt.pop %v1322
    %v1324 = vmul.f32 %v1323, %v1322
    %v1325 = vmul.f32 %v1324, %v1323
    %v1326 = vmul.f32 0.5, %v1325
    %v1327 = vsub.f32 1.5, %v1326
    %v1328 = vmul.f32 %v1323, %v1327
    %v1329 = vmul.f32 %v1322, %v1328
    %vm1330 = vcmp.eq.f32.partialorder %v1322, inf
    %v1331 = vsel %vm1330, %v1322, %v1329
    %vm1332 = vcmp.eq.f32.partialorder %v1322, 0.0
    %v1333 = vand.u32 %v1322, 2147483648
    %v1334 = vsel %vm1332, %v1333, %v1331
    %vm1335 = vcmp.ge.f32.partialorder %v1321, 0.0
    %v1336 = vsub.f32 0.0, %v1334
    %v1337 = vsel %vm1335, %v1334, %v1336
    %v1338 = vld [vmem:[#allocation2 + $0x388] sm:$0xf]
    %v1339 = vld [vmem:[#allocation2 + $0x38c] sm:$0xf]
    %v1340 = vld [vmem:[#allocation2 + $0x390] sm:$0xf]
    %v1341 = vld [vmem:[#allocation2 + $0x394] sm:$0xf]
    %v1342 = vld [vmem:[#allocation2 + $0x398] sm:$0xf]
    %v1343 = vld [vmem:[#allocation2 + $0x39c] sm:$0xf]
    %v1344 = vld [vmem:[#allocation2 + $0x3a0] sm:$0xf]
    %v1345 = vld [vmem:[#allocation2 + $0x3a4] sm:$0xf]
    %v1346 = vld [vmem:[#allocation2 + $0x3a8] sm:$0xf]
    %v1347 = vld [vmem:[#allocation2 + $0x3ac] sm:$0xf]
    %v1348 = vld [vmem:[#allocation2 + $0x3b0] sm:$0xf]
    %v1349 = vld [vmem:[#allocation2 + $0x3b4] sm:$0xf]
    %v1350 = vld [vmem:[#allocation2 + $0x3b8] sm:$0xf]
    %v1351 = vld [vmem:[#allocation2 + $0x3bc] sm:$0xf]
    %v1352 = vld [vmem:[#allocation2 + $0x3c0] sm:$0xf]
    %v1353 = vld [vmem:[#allocation2 + $0x3c4] sm:$0xf]
    %v1354 = vunpack.c.l.bf16 %v1338
    %v1355 = vunpack.c.l.bf16 %v1339
    %v1356 = vunpack.c.l.bf16 %v1340
    %v1357 = vunpack.c.l.bf16 %v1341
    %v1358 = vunpack.c.l.bf16 %v1342
    %v1359 = vunpack.c.l.bf16 %v1343
    %v1360 = vunpack.c.l.bf16 %v1344
    %v1361 = vunpack.c.l.bf16 %v1345
    %v1362 = vunpack.c.l.bf16 %v1346
    %v1363 = vunpack.c.l.bf16 %v1347
    %v1364 = vunpack.c.l.bf16 %v1348
    %v1365 = vunpack.c.l.bf16 %v1349
    %v1366 = vunpack.c.l.bf16 %v1350
    %v1367 = vunpack.c.l.bf16 %v1351
    %v1368 = vunpack.c.l.bf16 %v1352
    %v1369 = vunpack.c.l.bf16 %v1353
    %v1370 = vld [vmem:[#allocation2 + $0x3c8] sm:$0xf]
    %v1371 = vld [vmem:[#allocation2 + $0x3cc] sm:$0xf]
    %v1372 = vld [vmem:[#allocation2 + $0x3d0] sm:$0xf]
    %v1373 = vld [vmem:[#allocation2 + $0x3d4] sm:$0xf]
    %v1374 = vld [vmem:[#allocation2 + $0x3d8] sm:$0xf]
    %v1375 = vld [vmem:[#allocation2 + $0x3dc] sm:$0xf]
    %v1376 = vld [vmem:[#allocation2 + $0x3e0] sm:$0xf]
    %v1377 = vld [vmem:[#allocation2 + $0x3e4] sm:$0xf]
    %v1378 = vld [vmem:[#allocation2 + $0x3e8] sm:$0xf]
    %v1379 = vld [vmem:[#allocation2 + $0x3ec] sm:$0xf]
    %v1380 = vld [vmem:[#allocation2 + $0x3f0] sm:$0xf]
    %v1381 = vld [vmem:[#allocation2 + $0x3f4] sm:$0xf]
    %v1382 = vld [vmem:[#allocation2 + $0x3f8] sm:$0xf]
    %v1383 = vld [vmem:[#allocation2 + $0x3fc] sm:$0xf]
    %v1384 = vld [vmem:[#allocation2 + $0x400] sm:$0xf]
    %v1385 = vld [vmem:[#allocation2 + $0x404] sm:$0xf]
    %v1386 = vunpack.c.l.bf16 %v1370
    %v1387 = vunpack.c.l.bf16 %v1371
    %v1388 = vunpack.c.l.bf16 %v1372
    %v1389 = vunpack.c.l.bf16 %v1373
    %v1390 = vunpack.c.l.bf16 %v1374
    %v1391 = vunpack.c.l.bf16 %v1375
    %v1392 = vunpack.c.l.bf16 %v1376
    %v1393 = vunpack.c.l.bf16 %v1377
    %v1394 = vunpack.c.l.bf16 %v1378
    %v1395 = vunpack.c.l.bf16 %v1379
    %v1396 = vunpack.c.l.bf16 %v1380
    %v1397 = vunpack.c.l.bf16 %v1381
    %v1398 = vunpack.c.l.bf16 %v1382
    %v1399 = vunpack.c.l.bf16 %v1383
    %v1400 = vunpack.c.l.bf16 %v1384
    %v1401 = vunpack.c.l.bf16 %v1385
    %v1402 = vmul.f32 %v1337, %v1337
    %1403 = vmatpush.msra.mxu0 %v1369
    %1404 = vmatpush.msra.mxu0 %v1368
    %1405 = vmatpush.msra.mxu0 %v1367
    %1406 = vmatpush.msra.mxu0 %v1366
    %1407 = vmatpush.msra.mxu0 %v1365
    %1408 = vmatpush.msra.mxu0 %v1364
    %1409 = vmatpush.msra.mxu0 %v1363
    %1410 = vmatpush.msra.mxu0 %v1362
    %1411 = vmatpush.msra.mxu0 %v1361
    %1412 = vmatpush.msra.mxu0 %v1360
    %1413 = vmatpush.msra.mxu0 %v1359
    %1414 = vmatpush.msra.mxu0 %v1358
    %1415 = vmatpush.msra.mxu0 %v1357
    %1416 = vmatpush.msra.mxu0 %v1356
    %1417 = vmatpush.msra.mxu0 %v1355
    %1418 = vmatpush.msra.mxu0 %v1354
    %1419 = vmatmul.f32.gmra.mxu0 %v1402
    %v1420 = vpop.f32.mrf.mxu0
    %v1421 = vadd.f32 0.0, %v1420
    %1422 = vdwg.mxu0
    %1423 = vmatpush.msra.mxu0 %v1401
    %1424 = vmatpush.msra.mxu0 %v1400
    %1425 = vmatpush.msra.mxu0 %v1399
    %1426 = vmatpush.msra.mxu0 %v1398
    %1427 = vmatpush.msra.mxu0 %v1397
    %1428 = vmatpush.msra.mxu0 %v1396
    %1429 = vmatpush.msra.mxu0 %v1395
    %1430 = vmatpush.msra.mxu0 %v1394
    %1431 = vmatpush.msra.mxu0 %v1393
    %1432 = vmatpush.msra.mxu0 %v1392
    %1433 = vmatpush.msra.mxu0 %v1391
    %1434 = vmatpush.msra.mxu0 %v1390
    %1435 = vmatpush.msra.mxu0 %v1389
    %1436 = vmatpush.msra.mxu0 %v1388
    %1437 = vmatpush.msra.mxu0 %v1387
    %1438 = vmatpush.msra.mxu0 %v1386
    %1439 = vmatmul.f32.gmra.mxu0 %v1421
    %v1440 = vpop.f32.mrf.mxu0
    %v1441 = vadd.f32 0.0, %v1440
    %1442 = vdwg.mxu0
    %v1443 = vmax.f32 %v1441, 1e-24
    %v1444 = vrsqrt.pop %v1443
    %v1445 = vmul.f32 %v1444, %v1443
    %v1446 = vmul.f32 %v1445, %v1444
    %v1447 = vmul.f32 0.5, %v1446
    %v1448 = vsub.f32 1.5, %v1447
    %v1449 = vmul.f32 %v1444, %v1448
    %vm1450 = vweird.f32 %v1443
    %vm1451 = vweird.f32 %v1444
    %vm1452 = vmor %vm1450, %vm1451
    %v1453 = vsel %vm1452, %v1444, %v1449
    %v1454 = vmul.f32 %v1337, %v1453
    %v1455 = vld [vmem:[#allocation2 + $0x408] sm:$0xf]
    %v1456 = vld [vmem:[#allocation2 + $0x40c] sm:$0xf]
    %v1457 = vld [vmem:[#allocation2 + $0x410] sm:$0xf]
    %v1458 = vld [vmem:[#allocation2 + $0x414] sm:$0xf]
    %v1459 = vld [vmem:[#allocation2 + $0x418] sm:$0xf]
    %v1460 = vld [vmem:[#allocation2 + $0x41c] sm:$0xf]
    %v1461 = vld [vmem:[#allocation2 + $0x420] sm:$0xf]
    %v1462 = vld [vmem:[#allocation2 + $0x424] sm:$0xf]
    %v1463 = vld [vmem:[#allocation2 + $0x428] sm:$0xf]
    %v1464 = vld [vmem:[#allocation2 + $0x42c] sm:$0xf]
    %v1465 = vld [vmem:[#allocation2 + $0x430] sm:$0xf]
    %v1466 = vld [vmem:[#allocation2 + $0x434] sm:$0xf]
    %v1467 = vld [vmem:[#allocation2 + $0x438] sm:$0xf]
    %v1468 = vld [vmem:[#allocation2 + $0x43c] sm:$0xf]
    %v1469 = vld [vmem:[#allocation2 + $0x440] sm:$0xf]
    %v1470 = vld [vmem:[#allocation2 + $0x444] sm:$0xf]
    %v1471 = vld [vmem:[#allocation5 + $0x38] sm:$0x1]
    %v1472 = vpack.c.bf16 %v1454, %v1454
    %v1473 = vperm.slane %v1471, 0
    %v1490 = vunpack.c.l.b16 %v1455
    %v1491 = vunpack.c.l.b16 %v1456
    %v1492 = vunpack.c.l.b16 %v1457
    %v1493 = vunpack.c.l.b16 %v1458
    %v1494 = vunpack.c.l.b16 %v1459
    %v1495 = vunpack.c.l.b16 %v1460
    %v1496 = vunpack.c.l.b16 %v1461
    %v1497 = vunpack.c.l.b16 %v1462
    %v1498 = vunpack.c.l.b16 %v1463
    %v1499 = vunpack.c.l.b16 %v1464
    %v1500 = vunpack.c.l.b16 %v1465
    %v1501 = vunpack.c.l.b16 %v1466
    %v1502 = vunpack.c.l.b16 %v1467
    %v1503 = vunpack.c.l.b16 %v1468
    %v1504 = vunpack.c.l.b16 %v1469
    %v1505 = vunpack.c.l.b16 %v1470
    %v1506 = vpack.c.b16 %v1491, %v1490
    %v1507 = vpack.c.b16 %v1493, %v1492
    %v1508 = vpack.c.b16 %v1495, %v1494
    %v1509 = vpack.c.b16 %v1497, %v1496
    %v1510 = vpack.c.b16 %v1499, %v1498
    %v1511 = vpack.c.b16 %v1501, %v1500
    %v1512 = vpack.c.b16 %v1503, %v1502
    %v1513 = vpack.c.b16 %v1505, %v1504
    %1522 = vmatpush.bf16.msra.mxu0 %v1513
    %1523 = vmatpush.bf16.msra.mxu0 %v1512
    %1524 = vmatpush.bf16.msra.mxu0 %v1511
    %1525 = vmatpush.bf16.msra.mxu0 %v1510
    %1526 = vmatpush.bf16.msra.mxu0 %v1509
    %1527 = vmatpush.bf16.msra.mxu0 %v1508
    %1528 = vmatpush.bf16.msra.mxu0 %v1507
    %1529 = vmatpush.bf16.msra.mxu0 %v1506
    %1530 = vmatmul.bf16.gmra.mxu0 %v1472
    %v1531 = vpop.f32.mrf.mxu0
    %v1532 = vadd.f32 %v1473, %v1531
    %v1533 = vpop.f32.mrf.mxu0
    %1534 = vdwg.mxu0
    %v1535 = vld [vmem:[#allocation2 + $0x448] sm:$0xf]
    %v1536 = vld [vmem:[#allocation2 + $0x44c] sm:$0xf]
    %v1537 = vld [vmem:[#allocation2 + $0x450] sm:$0xf]
    %v1538 = vld [vmem:[#allocation2 + $0x454] sm:$0xf]
    %v1539 = vld [vmem:[#allocation2 + $0x458] sm:$0xf]
    %v1540 = vld [vmem:[#allocation2 + $0x45c] sm:$0xf]
    %v1541 = vld [vmem:[#allocation2 + $0x460] sm:$0xf]
    %v1542 = vld [vmem:[#allocation2 + $0x464] sm:$0xf]
    %v1543 = vld [vmem:[#allocation2 + $0x468] sm:$0xf]
    %v1544 = vld [vmem:[#allocation2 + $0x46c] sm:$0xf]
    %v1545 = vld [vmem:[#allocation2 + $0x470] sm:$0xf]
    %v1546 = vld [vmem:[#allocation2 + $0x474] sm:$0xf]
    %v1547 = vld [vmem:[#allocation2 + $0x478] sm:$0xf]
    %v1548 = vld [vmem:[#allocation2 + $0x47c] sm:$0xf]
    %v1549 = vld [vmem:[#allocation2 + $0x480] sm:$0xf]
    %v1550 = vld [vmem:[#allocation2 + $0x484] sm:$0xf]
    %v1551 = vld [vmem:[#allocation5 + $0x40] sm:$0x1]
    %v1552 = vpack.c.bf16 %v1532, %v1532
    %v1553 = vperm.slane %v1551, 0
    %v1570 = vunpack.c.l.b16 %v1535
    %v1571 = vunpack.c.l.b16 %v1536
    %v1572 = vunpack.c.l.b16 %v1537
    %v1573 = vunpack.c.l.b16 %v1538
    %v1574 = vunpack.c.l.b16 %v1539
    %v1575 = vunpack.c.l.b16 %v1540
    %v1576 = vunpack.c.l.b16 %v1541
    %v1577 = vunpack.c.l.b16 %v1542
    %v1578 = vunpack.c.l.b16 %v1543
    %v1579 = vunpack.c.l.b16 %v1544
    %v1580 = vunpack.c.l.b16 %v1545
    %v1581 = vunpack.c.l.b16 %v1546
    %v1582 = vunpack.c.l.b16 %v1547
    %v1583 = vunpack.c.l.b16 %v1548
    %v1584 = vunpack.c.l.b16 %v1549
    %v1585 = vunpack.c.l.b16 %v1550
    %v1586 = vpack.c.b16 %v1571, %v1570
    %v1587 = vpack.c.b16 %v1573, %v1572
    %v1588 = vpack.c.b16 %v1575, %v1574
    %v1589 = vpack.c.b16 %v1577, %v1576
    %v1590 = vpack.c.b16 %v1579, %v1578
    %v1591 = vpack.c.b16 %v1581, %v1580
    %v1592 = vpack.c.b16 %v1583, %v1582
    %v1593 = vpack.c.b16 %v1585, %v1584
    %1602 = vmatpush.bf16.msra.mxu0 %v1593
    %1603 = vmatpush.bf16.msra.mxu0 %v1592
    %1604 = vmatpush.bf16.msra.mxu0 %v1591
    %1605 = vmatpush.bf16.msra.mxu0 %v1590
    %1606 = vmatpush.bf16.msra.mxu0 %v1589
    %1607 = vmatpush.bf16.msra.mxu0 %v1588
    %1608 = vmatpush.bf16.msra.mxu0 %v1587
    %1609 = vmatpush.bf16.msra.mxu0 %v1586
    %1610 = vmatmul.bf16.gmra.mxu0 %v1552
    %v1611 = vpop.f32.mrf.mxu0
    %v1612 = vadd.f32 %v1553, %v1611
    %v1613 = vpop.f32.mrf.mxu0
    %1614 = vdwg.mxu0
    %v1615 = vmax.f32 %v1612, 0.0
    %1616 = vst [vmem:[#allocation7] sm:$0x3] %v1615
    // Predicated region
    $region26: #{forward.1} parent=1 // pred_check
      _
    $region27: #{forward.1} parent=1 // pred_check_branch
      %1618 = sbr.rel (0) target = $region29
    $region28: #{forward.1} parent=1 // pred_region
      %1620 = vsyncadd [#allocation4], 0
      %s1622 = sshll.u32 [#allocation7], 4
      %s1623 = int_to_ptr.vmem [resolvable:$true] %s1622
      %s1624 = sshll.u32 %s4, 4
      %s1625 = int_to_ptr.hbm [resolvable:$true] %s1624
      %1627 = dma.vmem_to_hbm [thread:$0]  %s1623, 32, %s1625, [#allocation4]
    $region29: #{forward.1} parent=1 // pred_fallthru
      _
    // Predicated region
    $region30: #{forward.1} parent=1 // pred_check
      _
    $region31: #{forward.1} parent=1 // pred_check_branch
      %1629 = sbr.rel (0) target = $region33
    $region32: #{forward.1} parent=1 // pred_region
      %1631 = dma.done [#allocation4], 32
    $region33: #{forward.1} parent=1 // pred_fallthru
      _
    %1632 = vsyncpa [#allocation3], 1
    %1633 = vsyncpa [#allocation6], 1
    %1634 = vsyncpa [#allocation4], 1

</llo_original>
